<compile_context>
chip_gen: v6e
topology: v6e:2x2x1
jax: 0.10.0
libtpu: 0.0.40
codegen_flags: <defaults>
</compile_context>

<pallas_src>
import functools

import jax
import jax.numpy as jnp
from jax.experimental import pallas as pl
from jax.experimental.pallas import tpu as pltpu


def _round_up(x, m):
    return ((x + m - 1) // m) * m


def _cdiv(a, b):
    return (a + b - 1) // b


def _vmem_budget_bytes():
    """Generation-aware VMEM budget (v5e/v6e: 128 MiB physical, v7x: 64 MiB)."""
    cap = 64 << 20
    try:
        cap = int(getattr(pltpu.get_tpu_info(), "vmem_capacity_bytes", cap) or cap)
    except Exception:
        pass
    return max(24 << 20, min(int(cap * 0.7), 64 << 20))


def _make_kernel(taps, Cp, tm, act_norm, eps):
    def kernel(w_ref, x_ref, b_ref, g_ref, beta_ref, o_ref):
        # w_ref:    (T, OC, Cp)        per-tap conv weights (grid-invariant, resident)
        # x_ref:    (s*s*Cp, tm+halo)  phase-stacked, flattened activation slab
        # b/g/beta: (OC, 1)            conv bias / LN gamma / LN beta
        # o_ref:    (OC, tm)           lane-dense, channel-major output tile
        acc = jnp.zeros(o_ref.shape, jnp.float32)
        phase_vals = {}
        for t, (p, off) in enumerate(taps):
            if p not in phase_vals:
                # static, sublane-aligned slice of the resident slab (one load per phase)
                phase_vals[p] = x_ref[p * Cp:(p + 1) * Cp, :]
            xs = phase_vals[p][:, off:off + tm]       # static lane shift (in-VMEM)
            acc = acc + jnp.dot(w_ref[t], xs, preferred_element_type=jnp.float32)
        y = acc + b_ref[...]
        if act_norm:
            # channels_first LayerNorm: channels on the sublane axis (true OC, no
            # padding) -> exact mean/var over axis 0, all in f32; then SiLU.
            u = jnp.mean(y, axis=0, keepdims=True)
            dlt = y - u
            var = jnp.mean(dlt * dlt, axis=0, keepdims=True)
            y = dlt * jax.lax.rsqrt(var + eps)
            y = g_ref[...] * y + beta_ref[...]
            y = y * jax.nn.sigmoid(y)
        o_ref[...] = y.astype(o_ref.dtype)

    return kernel


def basic_conv2d(x, weight, bias, ln_weight, ln_bias, *, stride=1, padding=0,
                 dilation=1, act_norm=False, eps=1e-6,
                 compute_dtype=jnp.float32, tm_max=1024):
    """Forward of BasicConv2d (transpose=False path).

    x:        (N, C, H, W)      float32, NCHW like PyTorch
    weight:   (OC, C, KH, KW)   conv weight (OIHW)
    bias:     (OC,)             conv bias
    ln_weight/ln_bias: (OC,)    LayerNorm affine params (channels_first)
    compute_dtype:              dtype of the MXU operands (f32 or bf16);
                                LN/SiLU always run in f32.
    """
    N, C, H, W = x.shape
    OC, Cw, KH, KW = weight.shape
    assert Cw == C, (Cw, C)
    s, d, P = stride, dilation, padding
    tm_max = max(128, (tm_max // 128) * 128)

    Hp0, Wp0 = H + 2 * P, W + 2 * P
    OH = (Hp0 - d * (KH - 1) - 1) // s + 1
    OW = (Wp0 - d * (KW - 1) - 1) // s + 1

    # ---- dtype-aware contraction (channel) alignment ----
    isz = jnp.dtype(compute_dtype).itemsize
    c_align = max(8, 32 // isz)              # 8 for f32, 16 for bf16, 32 for int8/fp8
    Cp = _round_up(C, c_align)

    # ---- phase decomposition (space-to-depth by stride): makes every tap a
    #      constant flat shift of the per-phase flattened spatial axis ----
    Hp, Wp = _round_up(Hp0, s), _round_up(Wp0, s)
    Hs, Ws = Hp // s, Wp // s
    P2 = s * s
    L = Hs * Ws                              # per-phase flattened spatial length
    J = OH * Ws                              # output flat length (row stride = Ws)

    taps = []                                # (phase, flat lane offset), all static
    for kh in range(KH):
        qh, rh = divmod(kh * d, s)
        for kw in range(KW):
            qw, rw = divmod(kw * d, s)
            taps.append((rh * s + rw, qh * Ws + qw))
    T = KH * KW
    off_max = max(off for _, off in taps)
    halo = _round_up(off_max, 128) if off_max else 0

    # ---- VMEM-budgeted spatial (lane) tile, near-equal tiles to minimize padding ----
    budget = _vmem_budget_bytes()
    per_lane = 2 * P2 * Cp * isz + 2 * OC * 4 + 6 * OC * 4      # in dbuf + out dbuf + temps
    fixed = 2 * P2 * Cp * halo * isz + 2 * T * OC * Cp * isz + (2 << 20)
    tm_cap = min(tm_max, ((budget - fixed) // per_lane) // 128 * 128)
    if tm_cap < 128:
        # TODO(synk): halo-tiled / manual-DMA path for slabs exceeding the VMEM budget.
        raise NotImplementedError("BasicConv2d: activation slab does not fit VMEM budget")
    n_tiles = _cdiv(J, tm_cap)
    tm = _round_up(_cdiv(J, n_tiles), 128)
    Jp = n_tiles * tm

    # ---- wrapper-side rearrangement (~1x input traffic; cast to compute_dtype first) ----
    xp = jnp.pad(x, ((0, 0), (0, 0), (P, P), (P, P))).astype(compute_dtype)
    xp = jnp.pad(xp, ((0, 0), (0, 0), (0, Hp - Hp0), (0, Wp - Wp0)))
    # (N, C, Hs, s, Ws, s) -> (N, s, s, C, Hs, Ws): phase-major, then channels
    xph = xp.reshape(N, C, Hs, s, Ws, s).transpose(0, 3, 5, 1, 2, 4)
    xph = jnp.pad(xph, ((0, 0), (0, 0), (0, 0), (0, Cp - C), (0, 0), (0, 0)))
    xflat = xph.reshape(N, P2 * Cp, L)
    Lpad = max(L, Jp + halo)
    xflat = jnp.pad(xflat, ((0, 0), (0, 0), (0, Lpad - L)))
    # per-tile slabs with the halo duplicated (duplication ~ (tm+halo)/tm, not KH*KW)
    xtiles = jnp.stack(
        [xflat[:, :, i * tm: i * tm + tm + halo] for i in range(n_tiles)], axis=1
    ).reshape(N * n_tiles, P2 * Cp, tm + halo)

    # ---- weights / affine params ----
    wt = weight.transpose(2, 3, 0, 1).reshape(T, OC, C)         # (kh,kw) order == taps
    wt = jnp.pad(wt, ((0, 0), (0, 0), (0, Cp - C))).astype(compute_dtype)
    b2 = bias.reshape(OC, 1).astype(jnp.float32)
    g2 = ln_weight.reshape(OC, 1).astype(jnp.float32)
    beta2 = ln_bias.reshape(OC, 1).astype(jnp.float32)

    NT = n_tiles
    out = pl.pallas_call(
        _make_kernel(taps, Cp, tm, act_norm, eps),
        out_shape=jax.ShapeDtypeStruct((N, OC, Jp), jnp.float32),
        grid=(N, n_tiles),
        in_specs=[
            pl.BlockSpec((T, OC, Cp), lambda n, i: (0, 0, 0)),                  # per-tap weights
            pl.BlockSpec((None, P2 * Cp, tm + halo),
                         lambda n, i: (n * NT + i, 0, 0)),                      # activation slab
            pl.BlockSpec((OC, 1), lambda n, i: (0, 0)),                         # conv bias
            pl.BlockSpec((OC, 1), lambda n, i: (0, 0)),                         # LN gamma
            pl.BlockSpec((OC, 1), lambda n, i: (0, 0)),                         # LN beta
        ],
        out_specs=pl.BlockSpec((None, OC, tm), lambda n, i: (n, 0, i)),
        compiler_params=pltpu.CompilerParams(
            dimension_semantics=("parallel", "parallel"),
            vmem_limit_bytes=int(budget)),
    )(wt, xtiles, b2, g2, beta2)

    # Already channel-major: drop flat padding and the Ws>OW dead columns.
    y = out[:, :, :OH * Ws].reshape(N, OC, OH, Ws)
    if Ws != OW:
        y = y[:, :, :, :OW]
    return y


def _reference(x, weight, bias, ln_weight, ln_bias, *, stride, padding,
               dilation, act_norm, eps=1e-6):
    y = jax.lax.conv_general_dilated(
        x, weight, window_strides=(stride, stride),
        padding=[(padding, padding), (padding, padding)],
        rhs_dilation=(dilation, dilation),
        dimension_numbers=('NCHW', 'OIHW', 'NCHW'))
    y = y + bias[None, :, None, None]
    if act_norm:
        u = y.mean(axis=1, keepdims=True)
        s = ((y - u) ** 2).mean(axis=1, keepdims=True)
        y = (y - u) / jnp.sqrt(s + eps)
        y = ln_weight[None, :, None, None] * y + ln_bias[None, :, None, None]
        y = y * jax.nn.sigmoid(y)
    return y


if __name__ == "__main__":
    # Module config: BasicConv2d(in_channels=4, out_channels=8, kernel_size=3,
    #                            stride=1, padding=1, act_norm=True)
    N, C_in, H, W = 2, 4, 16, 16
    C_out, KH, KW = 8, 3, 3

    key = jax.random.PRNGKey(0)
    kx, kw = jax.random.split(key)

    x = jax.random.normal(kx, (N, C_in, H, W), dtype=jnp.float32)
    # _init_weights: trunc_normal_(std=0.02) on conv weight, bias = 0
    weight = 0.02 * jax.random.truncated_normal(
        kw, -2.0, 2.0, (C_out, C_in, KH, KW), dtype=jnp.float32)
    bias = jnp.zeros((C_out,), dtype=jnp.float32)
    # LayerNorm params: weight=ones, bias=zeros
    ln_w = jnp.ones((C_out,), dtype=jnp.float32)
    ln_b = jnp.zeros((C_out,), dtype=jnp.float32)

    def check(run, ref_kwargs, tol, shape):
        y = jax.block_until_ready(run(x, weight, bias, ln_w, ln_b))
        y_ref = _reference(x, weight, bias, ln_w, ln_b, **ref_kwargs)
        assert y.shape == shape, (y.shape, shape)
        err = float(jnp.max(jnp.abs(y - y_ref)))
        assert jnp.allclose(y, y_ref, atol=tol, rtol=tol), err

    # 1) exact-semantics f32 path (stride=1, padding=1, act_norm=True)
    check(functools.partial(basic_conv2d, stride=1, padding=1, dilation=1,
                            act_norm=True, compute_dtype=jnp.float32),
          dict(stride=1, padding=1, dilation=1, act_norm=True),
          2e-4, (N, C_out, 16, 16))

    # 2) bf16 MXU operands (perf path for v5e/v6e/v7x); LN/SiLU stay in f32.
    check(functools.partial(basic_conv2d, stride=1, padding=1, dilation=1,
                            act_norm=True, compute_dtype=jnp.bfloat16),
          dict(stride=1, padding=1, dilation=1, act_norm=True),
          5e-2, (N, C_out, 16, 16))

    # 3) stride-2, act_norm=False (exercises the 4-phase decomposition path)
    check(functools.partial(basic_conv2d, stride=2, padding=1, dilation=1,
                            act_norm=False, compute_dtype=jnp.float32),
          dict(stride=2, padding=1, dilation=1, act_norm=False),
          2e-4, (N, C_out, 8, 8))

    # 4) dilation=2, padding=2 (exercises dilated tap offsets)
    check(functools.partial(basic_conv2d, stride=1, padding=2, dilation=2,
                            act_norm=True, compute_dtype=jnp.float32),
          dict(stride=1, padding=2, dilation=2, act_norm=True),
          2e-4, (N, C_out, 16, 16))

    print("KERNEL_OK")
</pallas_src>

<mosaic_0001>
module attributes {stable_mosaic.version = 11 : i64} {
  func.func @kernel(%arg0: i32, %arg1: i32, %arg2: memref<9x8x8xf32, #tpu.memory_space<vmem>>, %arg3: memref<1x8x512xf32, #tpu.memory_space<vmem>>, %arg4: memref<8x1xf32, #tpu.memory_space<vmem>>, %arg5: memref<8x1xf32, #tpu.memory_space<vmem>>, %arg6: memref<8x1xf32, #tpu.memory_space<vmem>>, %arg7: memref<1x8x384xf32, #tpu.memory_space<vmem>>) attributes {dimension_semantics = [#tpu.dimension_semantics<parallel>, #tpu.dimension_semantics<parallel>], iteration_bounds = array<i64: 2, 1>, scalar_prefetch = 0 : i64, scratch_operands = 0 : i64, tpu.core_type = #tpu.core_type<tc>, window_params = [{pipeline_mode = #tpu.pipeline_mode<synchronous>, transform_indices = @transform_0, window_bounds = array<i64: 9, 8, 8>}, {transform_indices = @transform_1, window_bounds = array<i64: 1, 8, 512>}, {pipeline_mode = #tpu.pipeline_mode<synchronous>, transform_indices = @transform_2, window_bounds = array<i64: 8, 1>}, {pipeline_mode = #tpu.pipeline_mode<synchronous>, transform_indices = @transform_3, window_bounds = array<i64: 8, 1>}, {pipeline_mode = #tpu.pipeline_mode<synchronous>, transform_indices = @transform_4, window_bounds = array<i64: 8, 1>}, {transform_indices = @transform_5, window_bounds = array<i64: 1, 8, 384>}]} {
    %cst = arith.constant 0.000000e+00 : f32
    %0 = vector.broadcast %cst : f32 to vector<8x384xf32>
    %c0 = arith.constant 0 : index
    %c0_0 = arith.constant 0 : index
    %c0_1 = arith.constant 0 : index
    %1 = vector.load %arg3[%c0, %c0_0, %c0_1] : memref<1x8x512xf32, #tpu.memory_space<vmem>>, vector<1x8x512xf32>
    %2 = vector.shape_cast %1 : vector<1x8x512xf32> to vector<8x512xf32>
    %3 = vector.extract_strided_slice %2 {offsets = [0, 0], sizes = [8, 384], strides = [1, 1]} : vector<8x512xf32> to vector<8x384xf32>
    %c0_2 = arith.constant 0 : index
    %c0_3 = arith.constant 0 : index
    %c0_4 = arith.constant 0 : index
    %4 = vector.load %arg2[%c0_2, %c0_3, %c0_4] : memref<9x8x8xf32, #tpu.memory_space<vmem>>, vector<1x8x8xf32>
    %5 = vector.shape_cast %4 : vector<1x8x8xf32> to vector<8x8xf32>
    %cst_5 = arith.constant dense<0.000000e+00> : vector<8x384xf32>
    %6 = tpu.matmul %5, %3, %cst_5 {dimension_numbers = #tpu.dot_dimension_numbers<[1], [0], [0], [1], [0, 0, 1, 1], [], []>} : vector<8x8xf32>, vector<8x384xf32>, vector<8x384xf32> -> vector<8x384xf32>
    %7 = arith.addf %0, %6 : vector<8x384xf32>
    %8 = vector.extract_strided_slice %2 {offsets = [0, 1], sizes = [8, 384], strides = [1, 1]} : vector<8x512xf32> to vector<8x384xf32>
    %c1 = arith.constant 1 : index
    %c0_6 = arith.constant 0 : index
    %c0_7 = arith.constant 0 : index
    %9 = vector.load %arg2[%c1, %c0_6, %c0_7] : memref<9x8x8xf32, #tpu.memory_space<vmem>>, vector<1x8x8xf32>
    %10 = vector.shape_cast %9 : vector<1x8x8xf32> to vector<8x8xf32>
    %cst_8 = arith.constant dense<0.000000e+00> : vector<8x384xf32>
    %11 = tpu.matmul %10, %8, %cst_8 {dimension_numbers = #tpu.dot_dimension_numbers<[1], [0], [0], [1], [0, 0, 1, 1], [], []>} : vector<8x8xf32>, vector<8x384xf32>, vector<8x384xf32> -> vector<8x384xf32>
    %12 = arith.addf %7, %11 : vector<8x384xf32>
    %13 = vector.extract_strided_slice %2 {offsets = [0, 2], sizes = [8, 384], strides = [1, 1]} : vector<8x512xf32> to vector<8x384xf32>
    %c2 = arith.constant 2 : index
    %c0_9 = arith.constant 0 : index
    %c0_10 = arith.constant 0 : index
    %14 = vector.load %arg2[%c2, %c0_9, %c0_10] : memref<9x8x8xf32, #tpu.memory_space<vmem>>, vector<1x8x8xf32>
    %15 = vector.shape_cast %14 : vector<1x8x8xf32> to vector<8x8xf32>
    %cst_11 = arith.constant dense<0.000000e+00> : vector<8x384xf32>
    %16 = tpu.matmul %15, %13, %cst_11 {dimension_numbers = #tpu.dot_dimension_numbers<[1], [0], [0], [1], [0, 0, 1, 1], [], []>} : vector<8x8xf32>, vector<8x384xf32>, vector<8x384xf32> -> vector<8x384xf32>
    %17 = arith.addf %12, %16 : vector<8x384xf32>
    %18 = vector.extract_strided_slice %2 {offsets = [0, 18], sizes = [8, 384], strides = [1, 1]} : vector<8x512xf32> to vector<8x384xf32>
    %c3 = arith.constant 3 : index
    %c0_12 = arith.constant 0 : index
    %c0_13 = arith.constant 0 : index
    %19 = vector.load %arg2[%c3, %c0_12, %c0_13] : memref<9x8x8xf32, #tpu.memory_space<vmem>>, vector<1x8x8xf32>
    %20 = vector.shape_cast %19 : vector<1x8x8xf32> to vector<8x8xf32>
    %cst_14 = arith.constant dense<0.000000e+00> : vector<8x384xf32>
    %21 = tpu.matmul %20, %18, %cst_14 {dimension_numbers = #tpu.dot_dimension_numbers<[1], [0], [0], [1], [0, 0, 1, 1], [], []>} : vector<8x8xf32>, vector<8x384xf32>, vector<8x384xf32> -> vector<8x384xf32>
    %22 = arith.addf %17, %21 : vector<8x384xf32>
    %23 = vector.extract_strided_slice %2 {offsets = [0, 19], sizes = [8, 384], strides = [1, 1]} : vector<8x512xf32> to vector<8x384xf32>
    %c4 = arith.constant 4 : index
    %c0_15 = arith.constant 0 : index
    %c0_16 = arith.constant 0 : index
    %24 = vector.load %arg2[%c4, %c0_15, %c0_16] : memref<9x8x8xf32, #tpu.memory_space<vmem>>, vector<1x8x8xf32>
    %25 = vector.shape_cast %24 : vector<1x8x8xf32> to vector<8x8xf32>
    %cst_17 = arith.constant dense<0.000000e+00> : vector<8x384xf32>
    %26 = tpu.matmul %25, %23, %cst_17 {dimension_numbers = #tpu.dot_dimension_numbers<[1], [0], [0], [1], [0, 0, 1, 1], [], []>} : vector<8x8xf32>, vector<8x384xf32>, vector<8x384xf32> -> vector<8x384xf32>
    %27 = arith.addf %22, %26 : vector<8x384xf32>
    %28 = vector.extract_strided_slice %2 {offsets = [0, 20], sizes = [8, 384], strides = [1, 1]} : vector<8x512xf32> to vector<8x384xf32>
    %c5 = arith.constant 5 : index
    %c0_18 = arith.constant 0 : index
    %c0_19 = arith.constant 0 : index
    %29 = vector.load %arg2[%c5, %c0_18, %c0_19] : memref<9x8x8xf32, #tpu.memory_space<vmem>>, vector<1x8x8xf32>
    %30 = vector.shape_cast %29 : vector<1x8x8xf32> to vector<8x8xf32>
    %cst_20 = arith.constant dense<0.000000e+00> : vector<8x384xf32>
    %31 = tpu.matmul %30, %28, %cst_20 {dimension_numbers = #tpu.dot_dimension_numbers<[1], [0], [0], [1], [0, 0, 1, 1], [], []>} : vector<8x8xf32>, vector<8x384xf32>, vector<8x384xf32> -> vector<8x384xf32>
    %32 = arith.addf %27, %31 : vector<8x384xf32>
    %33 = vector.extract_strided_slice %2 {offsets = [0, 36], sizes = [8, 384], strides = [1, 1]} : vector<8x512xf32> to vector<8x384xf32>
    %c6 = arith.constant 6 : index
    %c0_21 = arith.constant 0 : index
    %c0_22 = arith.constant 0 : index
    %34 = vector.load %arg2[%c6, %c0_21, %c0_22] : memref<9x8x8xf32, #tpu.memory_space<vmem>>, vector<1x8x8xf32>
    %35 = vector.shape_cast %34 : vector<1x8x8xf32> to vector<8x8xf32>
    %cst_23 = arith.constant dense<0.000000e+00> : vector<8x384xf32>
    %36 = tpu.matmul %35, %33, %cst_23 {dimension_numbers = #tpu.dot_dimension_numbers<[1], [0], [0], [1], [0, 0, 1, 1], [], []>} : vector<8x8xf32>, vector<8x384xf32>, vector<8x384xf32> -> vector<8x384xf32>
    %37 = arith.addf %32, %36 : vector<8x384xf32>
    %38 = vector.extract_strided_slice %2 {offsets = [0, 37], sizes = [8, 384], strides = [1, 1]} : vector<8x512xf32> to vector<8x384xf32>
    %c7 = arith.constant 7 : index
    %c0_24 = arith.constant 0 : index
    %c0_25 = arith.constant 0 : index
    %39 = vector.load %arg2[%c7, %c0_24, %c0_25] : memref<9x8x8xf32, #tpu.memory_space<vmem>>, vector<1x8x8xf32>
    %40 = vector.shape_cast %39 : vector<1x8x8xf32> to vector<8x8xf32>
    %cst_26 = arith.constant dense<0.000000e+00> : vector<8x384xf32>
    %41 = tpu.matmul %40, %38, %cst_26 {dimension_numbers = #tpu.dot_dimension_numbers<[1], [0], [0], [1], [0, 0, 1, 1], [], []>} : vector<8x8xf32>, vector<8x384xf32>, vector<8x384xf32> -> vector<8x384xf32>
    %42 = arith.addf %37, %41 : vector<8x384xf32>
    %43 = vector.extract_strided_slice %2 {offsets = [0, 38], sizes = [8, 384], strides = [1, 1]} : vector<8x512xf32> to vector<8x384xf32>
    %c8 = arith.constant 8 : index
    %c0_27 = arith.constant 0 : index
    %c0_28 = arith.constant 0 : index
    %44 = vector.load %arg2[%c8, %c0_27, %c0_28] : memref<9x8x8xf32, #tpu.memory_space<vmem>>, vector<1x8x8xf32>
    %45 = vector.shape_cast %44 : vector<1x8x8xf32> to vector<8x8xf32>
    %cst_29 = arith.constant dense<0.000000e+00> : vector<8x384xf32>
    %46 = tpu.matmul %45, %43, %cst_29 {dimension_numbers = #tpu.dot_dimension_numbers<[1], [0], [0], [1], [0, 0, 1, 1], [], []>} : vector<8x8xf32>, vector<8x384xf32>, vector<8x384xf32> -> vector<8x384xf32>
    %47 = arith.addf %42, %46 : vector<8x384xf32>
    %c0_30 = arith.constant 0 : index
    %c0_31 = arith.constant 0 : index
    %48 = vector.load %arg4[%c0_30, %c0_31] : memref<8x1xf32, #tpu.memory_space<vmem>>, vector<8x1xf32>
    %49 = vector.broadcast %48 : vector<8x1xf32> to vector<8x384xf32>
    %50 = arith.addf %47, %49 : vector<8x384xf32>
    %cst_32 = arith.constant dense<0.000000e+00> : vector<384xf32>
    %51 = vector.multi_reduction <add>, %50, %cst_32 [0] : vector<8x384xf32> to vector<384xf32>
    %52 = vector.shape_cast %51 : vector<384xf32> to vector<1x384xf32>
    %cst_33 = arith.constant 8.000000e+00 : f32
    %53 = vector.broadcast %cst_33 : f32 to vector<1x384xf32>
    %54 = arith.divf %52, %53 : vector<1x384xf32>
    %55 = vector.broadcast %54 : vector<1x384xf32> to vector<8x384xf32>
    %56 = arith.subf %50, %55 : vector<8x384xf32>
    %57 = arith.mulf %56, %56 : vector<8x384xf32>
    %cst_34 = arith.constant dense<0.000000e+00> : vector<384xf32>
    %58 = vector.multi_reduction <add>, %57, %cst_34 [0] : vector<8x384xf32> to vector<384xf32>
    %59 = vector.shape_cast %58 : vector<384xf32> to vector<1x384xf32>
    %cst_35 = arith.constant 8.000000e+00 : f32
    %60 = vector.broadcast %cst_35 : f32 to vector<1x384xf32>
    %61 = arith.divf %59, %60 : vector<1x384xf32>
    %cst_36 = arith.constant 9.99999997E-7 : f32
    %62 = vector.broadcast %cst_36 : f32 to vector<1x384xf32>
    %63 = arith.addf %61, %62 : vector<1x384xf32>
    %64 = math.rsqrt %63 : vector<1x384xf32>
    %65 = vector.broadcast %64 : vector<1x384xf32> to vector<8x384xf32>
    %66 = arith.mulf %56, %65 : vector<8x384xf32>
    %c0_37 = arith.constant 0 : index
    %c0_38 = arith.constant 0 : index
    %67 = vector.load %arg5[%c0_37, %c0_38] : memref<8x1xf32, #tpu.memory_space<vmem>>, vector<8x1xf32>
    %68 = vector.broadcast %67 : vector<8x1xf32> to vector<8x384xf32>
    %69 = arith.mulf %68, %66 : vector<8x384xf32>
    %c0_39 = arith.constant 0 : index
    %c0_40 = arith.constant 0 : index
    %70 = vector.load %arg6[%c0_39, %c0_40] : memref<8x1xf32, #tpu.memory_space<vmem>>, vector<8x1xf32>
    %71 = vector.broadcast %70 : vector<8x1xf32> to vector<8x384xf32>
    %72 = arith.addf %69, %71 : vector<8x384xf32>
    %73 = arith.negf %72 : vector<8x384xf32>
    %74 = math.exp %73 : vector<8x384xf32>
    %cst_41 = arith.constant 1.000000e+00 : f32
    %75 = vector.broadcast %cst_41 : f32 to vector<8x384xf32>
    %76 = arith.addf %75, %74 : vector<8x384xf32>
    %77 = arith.divf %75, %76 : vector<8x384xf32>
    %78 = arith.mulf %72, %77 : vector<8x384xf32>
    %c0_42 = arith.constant 0 : index
    %c0_43 = arith.constant 0 : index
    %c0_44 = arith.constant 0 : index
    %79 = vector.load %arg7[%c0_42, %c0_43, %c0_44] : memref<1x8x384xf32, #tpu.memory_space<vmem>>, vector<1x8x384xf32>
    %80 = vector.shape_cast %79 : vector<1x8x384xf32> to vector<8x384xf32>
    %81 = vector.shape_cast %78 : vector<8x384xf32> to vector<1x8x384xf32>
    tpu.vector_store %arg7[%c0_42, %c0_43, %c0_44], %81 {strides = array<i32>} : memref<1x8x384xf32, #tpu.memory_space<vmem>>, vector<1x8x384xf32>,
    return
  }
  func.func @transform_0(%arg0: i32, %arg1: i32) -> (i32, i32, i32) {
    %c0_i32 = arith.constant 0 : i32
    %c0_i32_0 = arith.constant 0 : i32
    %c0_i32_1 = arith.constant 0 : i32
    %c0_i32_2 = arith.constant 0 : i32
    return %c0_i32, %c0_i32_0, %c0_i32_1 : i32, i32, i32
  }
  func.func @transform_1(%arg0: i32, %arg1: i32) -> (i32, i32, i32) {
    %c1_i32 = arith.constant 1 : i32
    %0 = arith.muli %arg0, %c1_i32 : i32
    %1 = arith.addi %0, %arg1 : i32
    %c0_i32 = arith.constant 0 : i32
    %c0_i32_0 = arith.constant 0 : i32
    %c0_i32_1 = arith.constant 0 : i32
    return %1, %c0_i32, %c0_i32_0 : i32, i32, i32
  }
  func.func @transform_2(%arg0: i32, %arg1: i32) -> (i32, i32) {
    %c0_i32 = arith.constant 0 : i32
    %c0_i32_0 = arith.constant 0 : i32
    %c0_i32_1 = arith.constant 0 : i32
    return %c0_i32, %c0_i32_0 : i32, i32
  }
  func.func @transform_3(%arg0: i32, %arg1: i32) -> (i32, i32) {
    %c0_i32 = arith.constant 0 : i32
    %c0_i32_0 = arith.constant 0 : i32
    %c0_i32_1 = arith.constant 0 : i32
    return %c0_i32, %c0_i32_0 : i32, i32
  }
  func.func @transform_4(%arg0: i32, %arg1: i32) -> (i32, i32) {
    %c0_i32 = arith.constant 0 : i32
    %c0_i32_0 = arith.constant 0 : i32
    %c0_i32_1 = arith.constant 0 : i32
    return %c0_i32, %c0_i32_0 : i32, i32
  }
  func.func @transform_5(%arg0: i32, %arg1: i32) -> (i32, i32, i32) {
    %c0_i32 = arith.constant 0 : i32
    %c0_i32_0 = arith.constant 0 : i32
    return %arg0, %c0_i32, %arg1 : i32, i32, i32
  }
}

</mosaic_0001>

<llo_original>
// kernel: tpu_custom_call.1
$region0: #{tpu_custom_call.1}
  #allocation0 [shape = 'u32[]', space=smem, size = 0x4, offset = 0x4, fixed_abs, tag = 'smem constant byte address 0x4 - core index']
  #allocation1 [shape = 'u32[144,128]{1,0:T(1,128)}', space=vmem, size = 0x12000, scoped, tag = 'internal scratch']
  %s0 = inlined_call_operand.vmem [shape: f32[9,8,8], index: 0, kind: input, shape index: {}]
  %s1 = inlined_call_operand.vmem [shape: f32[2,8,512], index: 1, kind: input, shape index: {}]
  %s2 = inlined_call_operand.vmem [shape: f32[8,1], index: 2, kind: input, shape index: {}]
  %s3 = inlined_call_operand.vmem [shape: f32[8,1], index: 3, kind: input, shape index: {}]
  %s4 = inlined_call_operand.vmem [shape: f32[8,1], index: 4, kind: input, shape index: {}]
  %s5 = inlined_call_operand.hbm [shape: f32[2,8,384], index: 5, kind: output, shape index: {}]
  %s6 = sld [smem:[#allocation0]]
  $region53: #{tpu_custom_call.1} parent=0
    _
  %s8 = ssub.s32 1, %s6
  %s9 = scalar_select 0, %s8, %s6
  $region1: #{tpu_custom_call.1} parent=0
    #allocation2 [shape = 'u8[24576]{0}', space=vmem, size = 0x6000, scoped, tag = 'output window, operand 0']
    #allocation3 [shape = 's32[2]{0}', space=sflag, size = 0x8, scoped, tag = 'scoped memory for tpu_custom_call.1']
    %10 = vsyncpa [#allocation3], 0
    %s11 = scalar_lea.sflag [#allocation3], 1
    %12 = vsyncpa %s11, 0
    loop: start=0, step=1, limit=4
    $region2: #{tpu_custom_call.1} parent=1 // loop_pre_header
      _
    $region3: #{tpu_custom_call.1} parent=1 // loop_header
      %s14 = sphi 0, %s18
      %p15 = scmp.ge.s32.totalorder %s14, 4
      %s21 = sphi 0, %s33
      %s22 = sphi 0, %s29
      %s23 = sphi 0, %s21
      %s24 = sphi 0, %s22
      %s25 = sphi 0, %s23
      %s26 = sphi 0, %s24
      %s34 = sphi 0, %s34
      %s36 = sphi 0, %s34
      %s37 = sphi 0, %s36
      %s51 = sphi 0, %s37
      %s59 = sphi 0, %s61
      %s62 = sphi 0, %s59
      %s63 = sphi 0, %s62
      %s79 = sphi 0, %s63
      %s83 = sphi 0, %s83
      %s85 = sphi 0, %s83
      %s86 = sphi 0, %s85
      %s100 = sphi 0, %s86
      %s104 = sphi 0, %s104
      %s106 = sphi 0, %s104
      %s107 = sphi 0, %s106
      %s121 = sphi 0, %s107
      %s125 = sphi 0, %s125
      %s127 = sphi 0, %s125
      %s128 = sphi 0, %s127
      %s142 = sphi 0, %s128
      %s150 = sphi 0, %s152
      %s153 = sphi 0, %s150
      %s154 = sphi 0, %s153
      %s170 = sphi 0, %s154
    $region4: #{tpu_custom_call.1} parent=1 // loop_header_branch
      %17 = sbr.rel (%p15) target = $region8
    $region5: #{tpu_custom_call.1} parent=1 // loop_body
      %s19 = ssub.s32 %s14, 1
      %s20 = ssub.s32 %s14, 2
      %s27 = sadd.s32 1, %s22
      %p28 = scmp.ge.s32.totalorder %s27, 1
      %s29 = scalar_select %p28, 0, %s27
      %s30 = sadd.s32 1, %s21
      %s31 = scalar_select %p28, %s30, %s21
      %p32 = scmp.ge.s32.totalorder %s31, 2
      %s33 = scalar_select %p32, 0, %s31
      %s35 = sadd.s32 %s34, 1
      %p38 = scmp.eq.s32.totalorder %s14, 1
      %p39 = scmp.ne.s32.totalorder %s34, %s36
      %p40 = scmp.eq.s32.totalorder %s14, 0
      %p41 = por %p39, %p40
      %p42 = scmp.ne.s32.totalorder %s34, %s36
      %p43 = scmp.eq.s32.totalorder %s19, 1
      %p44 = por %p42, %p43
      %p45 = scmp.ne.s32.totalorder %s36, %s37
      %p46 = scmp.eq.s32.totalorder %s19, 0
      %p47 = por %p45, %p46
      %p48 = scmp.ne.s32.totalorder %s36, %s37
      %p49 = scmp.eq.s32.totalorder %s20, 1
      %p50 = por %p48, %p49
      %p52 = scmp.ne.s32.totalorder %s37, %s51
      %p53 = scmp.eq.s32.totalorder %s20, 0
      %p54 = por %p52, %p53
      %s55 = sadd.s32 %s21, %s22
      %s56 = sadd.s32 %s33, %s29
      %s57 = ssub.s32 %s55, %s56
      %p58 = scmp.eq.s32.totalorder %s57, 0
      %s60 = sadd.s32 %s59, 1
      %s61 = scalar_select %p58, %s59, %s60
      %p64 = pneg %p58
      %p65 = scmp.eq.s32.totalorder %s14, 1
      %p66 = por %p64, %p65
      %p67 = scmp.ne.s32.totalorder %s59, %s62
      %p68 = scmp.eq.s32.totalorder %s14, 0
      %p69 = por %p67, %p68
      %p70 = scmp.ne.s32.totalorder %s59, %s62
      %p71 = scmp.eq.s32.totalorder %s19, 1
      %p72 = por %p70, %p71
      %p73 = scmp.ne.s32.totalorder %s62, %s63
      %p74 = scmp.eq.s32.totalorder %s19, 0
      %p75 = por %p73, %p74
      %p76 = scmp.ne.s32.totalorder %s62, %s63
      %p77 = scmp.eq.s32.totalorder %s20, 1
      %p78 = por %p76, %p77
      %p80 = scmp.ne.s32.totalorder %s63, %s79
      %p81 = scmp.eq.s32.totalorder %s20, 0
      %p82 = por %p80, %p81
      %s84 = sadd.s32 %s83, 1
      %p87 = scmp.eq.s32.totalorder %s14, 1
      %p88 = scmp.ne.s32.totalorder %s83, %s85
      %p89 = scmp.eq.s32.totalorder %s14, 0
      %p90 = por %p88, %p89
      %p91 = scmp.ne.s32.totalorder %s83, %s85
      %p92 = scmp.eq.s32.totalorder %s19, 1
      %p93 = por %p91, %p92
      %p94 = scmp.ne.s32.totalorder %s85, %s86
      %p95 = scmp.eq.s32.totalorder %s19, 0
      %p96 = por %p94, %p95
      %p97 = scmp.ne.s32.totalorder %s85, %s86
      %p98 = scmp.eq.s32.totalorder %s20, 1
      %p99 = por %p97, %p98
      %p101 = scmp.ne.s32.totalorder %s86, %s100
      %p102 = scmp.eq.s32.totalorder %s20, 0
      %p103 = por %p101, %p102
      %s105 = sadd.s32 %s104, 1
      %p108 = scmp.eq.s32.totalorder %s14, 1
      %p109 = scmp.ne.s32.totalorder %s104, %s106
      %p110 = scmp.eq.s32.totalorder %s14, 0
      %p111 = por %p109, %p110
      %p112 = scmp.ne.s32.totalorder %s104, %s106
      %p113 = scmp.eq.s32.totalorder %s19, 1
      %p114 = por %p112, %p113
      %p115 = scmp.ne.s32.totalorder %s106, %s107
      %p116 = scmp.eq.s32.totalorder %s19, 0
      %p117 = por %p115, %p116
      %p118 = scmp.ne.s32.totalorder %s106, %s107
      %p119 = scmp.eq.s32.totalorder %s20, 1
      %p120 = por %p118, %p119
      %p122 = scmp.ne.s32.totalorder %s107, %s121
      %p123 = scmp.eq.s32.totalorder %s20, 0
      %p124 = por %p122, %p123
      %s126 = sadd.s32 %s125, 1
      %p129 = scmp.eq.s32.totalorder %s14, 1
      %p130 = scmp.ne.s32.totalorder %s125, %s127
      %p131 = scmp.eq.s32.totalorder %s14, 0
      %p132 = por %p130, %p131
      %p133 = scmp.ne.s32.totalorder %s125, %s127
      %p134 = scmp.eq.s32.totalorder %s19, 1
      %p135 = por %p133, %p134
      %p136 = scmp.ne.s32.totalorder %s127, %s128
      %p137 = scmp.eq.s32.totalorder %s19, 0
      %p138 = por %p136, %p137
      %p139 = scmp.ne.s32.totalorder %s127, %s128
      %p140 = scmp.eq.s32.totalorder %s20, 1
      %p141 = por %p139, %p140
      %p143 = scmp.ne.s32.totalorder %s128, %s142
      %p144 = scmp.eq.s32.totalorder %s20, 0
      %p145 = por %p143, %p144
      %s146 = ssub.s32 %s21, %s33
      %s147 = ssub.s32 %s22, %s29
      %s148 = sor.u32 %s146, %s147
      %p149 = scmp.eq.s32.totalorder %s148, 0
      %s151 = sadd.s32 %s150, 1
      %s152 = scalar_select %p149, %s150, %s151
      %p155 = pneg %p149
      %p156 = scmp.eq.s32.totalorder %s14, 1
      %p157 = por %p155, %p156
      %p158 = scmp.ne.s32.totalorder %s150, %s153
      %p159 = scmp.eq.s32.totalorder %s14, 0
      %p160 = por %p158, %p159
      %p161 = scmp.ne.s32.totalorder %s150, %s153
      %p162 = scmp.eq.s32.totalorder %s19, 1
      %p163 = por %p161, %p162
      %p164 = scmp.ne.s32.totalorder %s153, %s154
      %p165 = scmp.eq.s32.totalorder %s19, 0
      %p166 = por %p164, %p165
      %p167 = scmp.ne.s32.totalorder %s153, %s154
      %p168 = scmp.eq.s32.totalorder %s20, 1
      %p169 = por %p167, %p168
      %p171 = scmp.ne.s32.totalorder %s154, %s170
      %p172 = scmp.eq.s32.totalorder %s20, 0
      %p173 = por %p171, %p172
      %p174 = scmp.le.s32.totalorder 1, %s14
      %p175 = scmp.lt.s32.totalorder %s14, 3
      %p176 = pnand %p174, %p175
      %p177 = pneg %p176
      // Predicated region
      $region9: #{tpu_custom_call.1} parent=5 // pred_check
        _
      $region10: #{tpu_custom_call.1} parent=5 // pred_check_branch
        %179 = sbr.rel (%p176) target = $region12
      $region11: #{tpu_custom_call.1} parent=5 // pred_region
        %s180 = ssub.s32 %s14, 1
        // Predicated region
        $region13: #{tpu_custom_call.1} parent=11 // pred_check
          %p181 = pneg %p47
        $region14: #{tpu_custom_call.1} parent=11 // pred_check_branch
          %183 = sbr.rel (%p181) target = $region16
        $region15: #{tpu_custom_call.1} parent=11 // pred_region
          _
        $region16: #{tpu_custom_call.1} parent=11 // pred_fallthru
          _
        // Predicated region
        $region17: #{tpu_custom_call.1} parent=11 // pred_check
          %p184 = pneg %p96
        $region18: #{tpu_custom_call.1} parent=11 // pred_check_branch
          %186 = sbr.rel (%p184) target = $region20
        $region19: #{tpu_custom_call.1} parent=11 // pred_region
          _
        $region20: #{tpu_custom_call.1} parent=11 // pred_fallthru
          _
        // Predicated region
        $region21: #{tpu_custom_call.1} parent=11 // pred_check
          %p187 = pneg %p117
        $region22: #{tpu_custom_call.1} parent=11 // pred_check_branch
          %189 = sbr.rel (%p187) target = $region24
        $region23: #{tpu_custom_call.1} parent=11 // pred_region
          _
        $region24: #{tpu_custom_call.1} parent=11 // pred_fallthru
          _
        // Predicated region
        $region25: #{tpu_custom_call.1} parent=11 // pred_check
          %p190 = pneg %p138
        $region26: #{tpu_custom_call.1} parent=11 // pred_check_branch
          %192 = sbr.rel (%p190) target = $region28
        $region27: #{tpu_custom_call.1} parent=11 // pred_region
          _
        $region28: #{tpu_custom_call.1} parent=11 // pred_fallthru
          _
      $region12: #{tpu_custom_call.1} parent=5 // pred_fallthru
        _
      %p193 = scmp.lt.s32.totalorder %s14, 2
      // Predicated region
      $region29: #{tpu_custom_call.1} parent=5 // pred_check
        %p194 = pneg %p193
      $region30: #{tpu_custom_call.1} parent=5 // pred_check_branch
        %196 = sbr.rel (%p194) target = $region32
      $region31: #{tpu_custom_call.1} parent=5 // pred_region
        // Predicated region
        $region33: #{tpu_custom_call.1} parent=31 // pred_check
          %p197 = pneg %p69
        $region34: #{tpu_custom_call.1} parent=31 // pred_check_branch
          %199 = sbr.rel (%p197) target = $region36
        $region35: #{tpu_custom_call.1} parent=31 // pred_region
          %s200 = sadd.s32 %s21, %s22
          %p201 = scmp.lt.s32.totalorder %s200, 1
          %s202 = scalar_select %p201, %s200, 1
          %s203 = smul.addr %s202, 4
          %s204 = smul.addr %s203, 8
          %s205 = scalar_lea.vmem %s1, %s204
          %s206 = sadd.s32 %s21, %s22
        $region36: #{tpu_custom_call.1} parent=31 // pred_fallthru
          _
      $region32: #{tpu_custom_call.1} parent=5 // pred_fallthru
        _
      %p207 = scmp.le.s32.totalorder 1, %s14
      %p208 = scmp.lt.s32.totalorder %s14, 3
      %p209 = pnand %p207, %p208
      %p210 = pneg %p209
      // Predicated region
      $region37: #{tpu_custom_call.1} parent=5 // pred_check
        _
      $region38: #{tpu_custom_call.1} parent=5 // pred_check_branch
        %212 = sbr.rel (%p209) target = $region40
      $region39: #{tpu_custom_call.1} parent=5 // pred_region
        %s213 = ssub.s32 %s14, 1
        %p214 = pneg %p47
        %p215 = pneg %p44
        %s216 = sadd.s32 %s23, %s24
        %p217 = scmp.lt.s32.totalorder %s216, 1
        %s218 = scalar_select %p217, %s216, 1
        %s219 = smul.addr %s218, 4
        %s220 = smul.addr %s219, 8
        %s221 = scalar_lea.vmem %s1, %s220
        %p222 = pneg %p75
        %p223 = pneg %p72
        %p224 = pneg %p96
        %p225 = pneg %p93
        %p226 = pneg %p117
        %p227 = pneg %p114
        %p228 = pneg %p138
        %p229 = pneg %p135
        %p230 = pneg %p166
        %p231 = pneg %p163
        %s232 = sand.u32 %s153, 1
        %s233 = scalar_lea.sflag [#allocation3], %s232
        %s234 = sand.u32 %s153, 1
        %s235 = smul.addr %s234, 24
        %s236 = scalar_lea.vmem [#allocation2], %s235
        %s237 = sadd.s32 %s23, %s24
        %p238 = scmp.lt.s32.totalorder %s237, 1
        %s239 = scalar_select %p238, %s237, 1
        %s240 = smul.addr %s239, 4
        %s241 = smul.addr %s240, 8
        %s242 = scalar_lea.vmem %s1, %s241
        %s243 = sadd.s32 %s23, %s24
        %s244 = smul.u32 3, %s24
        %v245 = vld [vmem:[%s242] sm:$0xff]
        %v246 = vld [vmem:[%s242 + $0x8] sm:$0xff]
        %v247 = vld [vmem:[%s242 + $0x10] sm:$0xff]
        %v248 = vld [vmem:[%s242 + $0x18] sm:$0xff]
        %v249 = vld [vmem:[%s0] sm:$0xff]
        %s250 = scalar_lea.vmem %s0, 8
        %v251 = vld [vmem:[%s250] sm:$0xff]
        %256 = vrot.lane.b32.xlu0 %v245, 127
        %v257 = vpop.permute.xlu0 %256
        %258 = vrot.lane.b32.xlu0 %v246, 127
        %v259 = vpop.permute.xlu0 %258
        %260 = vrot.lane.b32.xlu0 %v247, 127
        %v261 = vpop.permute.xlu0 %260
        %262 = vrot.lane.b32.xlu0 %v248, 127
        %v263 = vpop.permute.xlu0 %262
        %vm264 = vcmask 1039360
        %v265 = vsel %vm264, %v257, %v259
        %v266 = vsel %vm264, %v259, %v261
        %v267 = vsel %vm264, %v261, %v263
        %vm271 = vcmask 64512
        %v273 = vsel %vm271, %v251, 0
        %275 = vmatprep.subr.mxu0 0.0
        %276 = vmatpush1.msra.mxu0 0.0
        %277 = vmatprep.subr.mxu0 0.0
        %278 = vmatpush1.msra.mxu0 0.0
        %279 = vmatprep.subr.mxu0 0.0
        %280 = vmatpush1.msra.mxu0 0.0
        %281 = vmatprep.subr.mxu0 0.0
        %282 = vmatpush1.msra.mxu0 0.0
        %283 = vmatprep.subr.mxu0 0.0
        %284 = vmatpush1.msra.mxu0 0.0
        %285 = vmatprep.subr.mxu0 0.0
        %286 = vmatpush1.msra.mxu0 0.0
        %287 = vmatprep.subr.mxu0 0.0
        %288 = vmatpush1.msra.mxu0 0.0
        %289 = vmatprep.subr.mxu0 0.0
        %290 = vmatpush1.msra.mxu0 0.0
        %291 = vmatprep.subr.mxu0 0.0
        %292 = vmatpush1.msra.mxu0 0.0
        %293 = vmatprep.subr.mxu0 0.0
        %294 = vmatpush1.msra.mxu0 0.0
        %295 = vmatprep.subr.mxu0 0.0
        %296 = vmatpush1.msra.mxu0 0.0
        %297 = vmatprep.subr.mxu0 0.0
        %298 = vmatpush1.msra.mxu0 0.0
        %299 = vmatprep.subr.mxu0 0.0
        %300 = vmatpush1.msra.mxu0 0.0
        %301 = vmatprep.subr.mxu0 0.0
        %302 = vmatpush1.msra.mxu0 0.0
        %303 = vmatprep.subr.mxu0 0.0
        %304 = vmatpush1.msra.mxu0 0.0
        %305 = vmatprep.subr.mxu0 %v266
        %306 = vmatpush1.msra.mxu0 %v265
        %307 = vmatprep.subr.mxu0 0.0
        %308 = vmatpush2.msra.mxu0 0.0
        %309 = vmatprep.subr.mxu0 0.0
        %310 = vmatpush2.msra.mxu0 0.0
        %311 = vmatprep.subr.mxu0 0.0
        %312 = vmatpush2.msra.mxu0 0.0
        %313 = vmatprep.subr.mxu0 0.0
        %314 = vmatpush2.msra.mxu0 0.0
        %315 = vmatprep.subr.mxu0 0.0
        %316 = vmatpush2.msra.mxu0 0.0
        %317 = vmatprep.subr.mxu0 0.0
        %318 = vmatpush2.msra.mxu0 0.0
        %319 = vmatprep.subr.mxu0 0.0
        %320 = vmatpush2.msra.mxu0 0.0
        %321 = vmatprep.subr.mxu0 0.0
        %322 = vmatpush2.msra.mxu0 0.0
        %323 = vmatprep.subr.mxu0 0.0
        %324 = vmatpush2.msra.mxu0 0.0
        %325 = vmatprep.subr.mxu0 0.0
        %326 = vmatpush2.msra.mxu0 0.0
        %327 = vmatprep.subr.mxu0 0.0
        %328 = vmatpush2.msra.mxu0 0.0
        %329 = vmatprep.subr.mxu0 0.0
        %330 = vmatpush2.msra.mxu0 0.0
        %331 = vmatprep.subr.mxu0 0.0
        %332 = vmatpush2.msra.mxu0 0.0
        %333 = vmatprep.subr.mxu0 0.0
        %334 = vmatpush2.msra.mxu0 0.0
        %335 = vmatprep.subr.mxu0 0.0
        %336 = vmatpush2.msra.mxu0 0.0
        %337 = vmatprep.subr.mxu0 0.0
        %338 = vmatpush2.msra.mxu0 0.0
        %339 = vmatprep.mubr.f32.mxu0 0.0
        %340 = vmatmul.mubr.f32.gmra.mxu0 %v273
        %v341 = vpop.f32.mrf.mxu0
        %v342 = vadd.f32 0.0, %v341
        %v343 = vpop.f32.mrf.mxu0
        %v344 = vadd.f32 0.0, %v343
        %345 = vdwg.mxu0
        %346 = vmatprep.subr.mxu0 0.0
        %347 = vmatpush1.msra.mxu0 0.0
        %348 = vmatprep.subr.mxu0 0.0
        %349 = vmatpush1.msra.mxu0 0.0
        %350 = vmatprep.subr.mxu0 0.0
        %351 = vmatpush1.msra.mxu0 0.0
        %352 = vmatprep.subr.mxu0 0.0
        %353 = vmatpush1.msra.mxu0 0.0
        %354 = vmatprep.subr.mxu0 0.0
        %355 = vmatpush1.msra.mxu0 0.0
        %356 = vmatprep.subr.mxu0 0.0
        %357 = vmatpush1.msra.mxu0 0.0
        %358 = vmatprep.subr.mxu0 0.0
        %359 = vmatpush1.msra.mxu0 0.0
        %360 = vmatprep.subr.mxu0 0.0
        %361 = vmatpush1.msra.mxu0 0.0
        %362 = vmatprep.subr.mxu0 0.0
        %363 = vmatpush1.msra.mxu0 0.0
        %364 = vmatprep.subr.mxu0 0.0
        %365 = vmatpush1.msra.mxu0 0.0
        %366 = vmatprep.subr.mxu0 0.0
        %367 = vmatpush1.msra.mxu0 0.0
        %368 = vmatprep.subr.mxu0 0.0
        %369 = vmatpush1.msra.mxu0 0.0
        %370 = vmatprep.subr.mxu0 0.0
        %371 = vmatpush1.msra.mxu0 0.0
        %372 = vmatprep.subr.mxu0 0.0
        %373 = vmatpush1.msra.mxu0 0.0
        %374 = vmatprep.subr.mxu0 0.0
        %375 = vmatpush1.msra.mxu0 0.0
        %376 = vmatprep.subr.mxu0 0.0
        %377 = vmatpush1.msra.mxu0 %v267
        %378 = vmatprep.subr.mxu0 0.0
        %379 = vmatpush2.msra.mxu0 0.0
        %380 = vmatprep.subr.mxu0 0.0
        %381 = vmatpush2.msra.mxu0 0.0
        %382 = vmatprep.subr.mxu0 0.0
        %383 = vmatpush2.msra.mxu0 0.0
        %384 = vmatprep.subr.mxu0 0.0
        %385 = vmatpush2.msra.mxu0 0.0
        %386 = vmatprep.subr.mxu0 0.0
        %387 = vmatpush2.msra.mxu0 0.0
        %388 = vmatprep.subr.mxu0 0.0
        %389 = vmatpush2.msra.mxu0 0.0
        %390 = vmatprep.subr.mxu0 0.0
        %391 = vmatpush2.msra.mxu0 0.0
        %392 = vmatprep.subr.mxu0 0.0
        %393 = vmatpush2.msra.mxu0 0.0
        %394 = vmatprep.subr.mxu0 0.0
        %395 = vmatpush2.msra.mxu0 0.0
        %396 = vmatprep.subr.mxu0 0.0
        %397 = vmatpush2.msra.mxu0 0.0
        %398 = vmatprep.subr.mxu0 0.0
        %399 = vmatpush2.msra.mxu0 0.0
        %400 = vmatprep.subr.mxu0 0.0
        %401 = vmatpush2.msra.mxu0 0.0
        %402 = vmatprep.subr.mxu0 0.0
        %403 = vmatpush2.msra.mxu0 0.0
        %404 = vmatprep.subr.mxu0 0.0
        %405 = vmatpush2.msra.mxu0 0.0
        %406 = vmatprep.subr.mxu0 0.0
        %407 = vmatpush2.msra.mxu0 0.0
        %408 = vmatprep.subr.mxu0 0.0
        %409 = vmatpush2.msra.mxu0 0.0
        %410 = vmatprep.mubr.f32.mxu0 0.0
        %411 = vmatmul.mubr.f32.gmra.mxu0 %v273
        %v412 = vpop.f32.mrf.mxu0
        %v413 = vadd.f32 0.0, %v412
        %v414 = vpop.f32.mrf.mxu0
        %415 = vdwg.mxu0
        %v417 = vsel %vm271, %v249, 0
        %419 = vmatprep.subr.mxu0 0.0
        %420 = vmatpush1.msra.mxu0 0.0
        %421 = vmatprep.subr.mxu0 0.0
        %422 = vmatpush1.msra.mxu0 0.0
        %423 = vmatprep.subr.mxu0 0.0
        %424 = vmatpush1.msra.mxu0 0.0
        %425 = vmatprep.subr.mxu0 0.0
        %426 = vmatpush1.msra.mxu0 0.0
        %427 = vmatprep.subr.mxu0 0.0
        %428 = vmatpush1.msra.mxu0 0.0
        %429 = vmatprep.subr.mxu0 0.0
        %430 = vmatpush1.msra.mxu0 0.0
        %431 = vmatprep.subr.mxu0 0.0
        %432 = vmatpush1.msra.mxu0 0.0
        %433 = vmatprep.subr.mxu0 0.0
        %434 = vmatpush1.msra.mxu0 0.0
        %435 = vmatprep.subr.mxu0 0.0
        %436 = vmatpush1.msra.mxu0 0.0
        %437 = vmatprep.subr.mxu0 0.0
        %438 = vmatpush1.msra.mxu0 0.0
        %439 = vmatprep.subr.mxu0 0.0
        %440 = vmatpush1.msra.mxu0 0.0
        %441 = vmatprep.subr.mxu0 0.0
        %442 = vmatpush1.msra.mxu0 0.0
        %443 = vmatprep.subr.mxu0 0.0
        %444 = vmatpush1.msra.mxu0 0.0
        %445 = vmatprep.subr.mxu0 0.0
        %446 = vmatpush1.msra.mxu0 0.0
        %447 = vmatprep.subr.mxu0 0.0
        %448 = vmatpush1.msra.mxu0 0.0
        %449 = vmatprep.subr.mxu0 %v246
        %450 = vmatpush1.msra.mxu0 %v245
        %451 = vmatprep.subr.mxu0 0.0
        %452 = vmatpush2.msra.mxu0 0.0
        %453 = vmatprep.subr.mxu0 0.0
        %454 = vmatpush2.msra.mxu0 0.0
        %455 = vmatprep.subr.mxu0 0.0
        %456 = vmatpush2.msra.mxu0 0.0
        %457 = vmatprep.subr.mxu0 0.0
        %458 = vmatpush2.msra.mxu0 0.0
        %459 = vmatprep.subr.mxu0 0.0
        %460 = vmatpush2.msra.mxu0 0.0
        %461 = vmatprep.subr.mxu0 0.0
        %462 = vmatpush2.msra.mxu0 0.0
        %463 = vmatprep.subr.mxu0 0.0
        %464 = vmatpush2.msra.mxu0 0.0
        %465 = vmatprep.subr.mxu0 0.0
        %466 = vmatpush2.msra.mxu0 0.0
        %467 = vmatprep.subr.mxu0 0.0
        %468 = vmatpush2.msra.mxu0 0.0
        %469 = vmatprep.subr.mxu0 0.0
        %470 = vmatpush2.msra.mxu0 0.0
        %471 = vmatprep.subr.mxu0 0.0
        %472 = vmatpush2.msra.mxu0 0.0
        %473 = vmatprep.subr.mxu0 0.0
        %474 = vmatpush2.msra.mxu0 0.0
        %475 = vmatprep.subr.mxu0 0.0
        %476 = vmatpush2.msra.mxu0 0.0
        %477 = vmatprep.subr.mxu0 0.0
        %478 = vmatpush2.msra.mxu0 0.0
        %479 = vmatprep.subr.mxu0 0.0
        %480 = vmatpush2.msra.mxu0 0.0
        %481 = vmatprep.subr.mxu0 0.0
        %482 = vmatpush2.msra.mxu0 0.0
        %483 = vmatprep.mubr.f32.mxu0 0.0
        %484 = vmatmul.mubr.f32.gmra.mxu0 %v417
        %v485 = vpop.f32.mrf.mxu0
        %v486 = vadd.f32 %v342, %v485
        %v487 = vpop.f32.mrf.mxu0
        %v488 = vadd.f32 %v344, %v487
        %489 = vdwg.mxu0
        %490 = vmatprep.subr.mxu0 0.0
        %491 = vmatpush1.msra.mxu0 0.0
        %492 = vmatprep.subr.mxu0 0.0
        %493 = vmatpush1.msra.mxu0 0.0
        %494 = vmatprep.subr.mxu0 0.0
        %495 = vmatpush1.msra.mxu0 0.0
        %496 = vmatprep.subr.mxu0 0.0
        %497 = vmatpush1.msra.mxu0 0.0
        %498 = vmatprep.subr.mxu0 0.0
        %499 = vmatpush1.msra.mxu0 0.0
        %500 = vmatprep.subr.mxu0 0.0
        %501 = vmatpush1.msra.mxu0 0.0
        %502 = vmatprep.subr.mxu0 0.0
        %503 = vmatpush1.msra.mxu0 0.0
        %504 = vmatprep.subr.mxu0 0.0
        %505 = vmatpush1.msra.mxu0 0.0
        %506 = vmatprep.subr.mxu0 0.0
        %507 = vmatpush1.msra.mxu0 0.0
        %508 = vmatprep.subr.mxu0 0.0
        %509 = vmatpush1.msra.mxu0 0.0
        %510 = vmatprep.subr.mxu0 0.0
        %511 = vmatpush1.msra.mxu0 0.0
        %512 = vmatprep.subr.mxu0 0.0
        %513 = vmatpush1.msra.mxu0 0.0
        %514 = vmatprep.subr.mxu0 0.0
        %515 = vmatpush1.msra.mxu0 0.0
        %516 = vmatprep.subr.mxu0 0.0
        %517 = vmatpush1.msra.mxu0 0.0
        %518 = vmatprep.subr.mxu0 0.0
        %519 = vmatpush1.msra.mxu0 0.0
        %520 = vmatprep.subr.mxu0 0.0
        %521 = vmatpush1.msra.mxu0 %v247
        %522 = vmatprep.subr.mxu0 0.0
        %523 = vmatpush2.msra.mxu0 0.0
        %524 = vmatprep.subr.mxu0 0.0
        %525 = vmatpush2.msra.mxu0 0.0
        %526 = vmatprep.subr.mxu0 0.0
        %527 = vmatpush2.msra.mxu0 0.0
        %528 = vmatprep.subr.mxu0 0.0
        %529 = vmatpush2.msra.mxu0 0.0
        %530 = vmatprep.subr.mxu0 0.0
        %531 = vmatpush2.msra.mxu0 0.0
        %532 = vmatprep.subr.mxu0 0.0
        %533 = vmatpush2.msra.mxu0 0.0
        %534 = vmatprep.subr.mxu0 0.0
        %535 = vmatpush2.msra.mxu0 0.0
        %536 = vmatprep.subr.mxu0 0.0
        %537 = vmatpush2.msra.mxu0 0.0
        %538 = vmatprep.subr.mxu0 0.0
        %539 = vmatpush2.msra.mxu0 0.0
        %540 = vmatprep.subr.mxu0 0.0
        %541 = vmatpush2.msra.mxu0 0.0
        %542 = vmatprep.subr.mxu0 0.0
        %543 = vmatpush2.msra.mxu0 0.0
        %544 = vmatprep.subr.mxu0 0.0
        %545 = vmatpush2.msra.mxu0 0.0
        %546 = vmatprep.subr.mxu0 0.0
        %547 = vmatpush2.msra.mxu0 0.0
        %548 = vmatprep.subr.mxu0 0.0
        %549 = vmatpush2.msra.mxu0 0.0
        %550 = vmatprep.subr.mxu0 0.0
        %551 = vmatpush2.msra.mxu0 0.0
        %552 = vmatprep.subr.mxu0 0.0
        %553 = vmatpush2.msra.mxu0 0.0
        %554 = vmatprep.mubr.f32.mxu0 0.0
        %555 = vmatmul.mubr.f32.gmra.mxu0 %v417
        %v556 = vpop.f32.mrf.mxu0
        %v557 = vadd.f32 %v413, %v556
        %v558 = vpop.f32.mrf.mxu0
        %559 = vdwg.mxu0
        %s560 = scalar_lea.vmem %s0, 16
        %v561 = vld [vmem:[%s560] sm:$0xff]
        %562 = vrot.lane.b32.xlu0 %v245, 126
        %v563 = vpop.permute.xlu0 %562
        %564 = vrot.lane.b32.xlu0 %v246, 126
        %v565 = vpop.permute.xlu0 %564
        %566 = vrot.lane.b32.xlu0 %v247, 126
        %v567 = vpop.permute.xlu0 %566
        %568 = vrot.lane.b32.xlu0 %v248, 126
        %v569 = vpop.permute.xlu0 %568
        %vm570 = vcmask 1031168
        %v571 = vsel %vm570, %v563, %v565
        %v572 = vsel %vm570, %v565, %v567
        %v573 = vsel %vm570, %v567, %v569
        %v578 = vsel %vm271, %v561, 0
        %580 = vmatprep.subr.mxu0 0.0
        %581 = vmatpush1.msra.mxu0 0.0
        %582 = vmatprep.subr.mxu0 0.0
        %583 = vmatpush1.msra.mxu0 0.0
        %584 = vmatprep.subr.mxu0 0.0
        %585 = vmatpush1.msra.mxu0 0.0
        %586 = vmatprep.subr.mxu0 0.0
        %587 = vmatpush1.msra.mxu0 0.0
        %588 = vmatprep.subr.mxu0 0.0
        %589 = vmatpush1.msra.mxu0 0.0
        %590 = vmatprep.subr.mxu0 0.0
        %591 = vmatpush1.msra.mxu0 0.0
        %592 = vmatprep.subr.mxu0 0.0
        %593 = vmatpush1.msra.mxu0 0.0
        %594 = vmatprep.subr.mxu0 0.0
        %595 = vmatpush1.msra.mxu0 0.0
        %596 = vmatprep.subr.mxu0 0.0
        %597 = vmatpush1.msra.mxu0 0.0
        %598 = vmatprep.subr.mxu0 0.0
        %599 = vmatpush1.msra.mxu0 0.0
        %600 = vmatprep.subr.mxu0 0.0
        %601 = vmatpush1.msra.mxu0 0.0
        %602 = vmatprep.subr.mxu0 0.0
        %603 = vmatpush1.msra.mxu0 0.0
        %604 = vmatprep.subr.mxu0 0.0
        %605 = vmatpush1.msra.mxu0 0.0
        %606 = vmatprep.subr.mxu0 0.0
        %607 = vmatpush1.msra.mxu0 0.0
        %608 = vmatprep.subr.mxu0 0.0
        %609 = vmatpush1.msra.mxu0 0.0
        %610 = vmatprep.subr.mxu0 %v572
        %611 = vmatpush1.msra.mxu0 %v571
        %612 = vmatprep.subr.mxu0 0.0
        %613 = vmatpush2.msra.mxu0 0.0
        %614 = vmatprep.subr.mxu0 0.0
        %615 = vmatpush2.msra.mxu0 0.0
        %616 = vmatprep.subr.mxu0 0.0
        %617 = vmatpush2.msra.mxu0 0.0
        %618 = vmatprep.subr.mxu0 0.0
        %619 = vmatpush2.msra.mxu0 0.0
        %620 = vmatprep.subr.mxu0 0.0
        %621 = vmatpush2.msra.mxu0 0.0
        %622 = vmatprep.subr.mxu0 0.0
        %623 = vmatpush2.msra.mxu0 0.0
        %624 = vmatprep.subr.mxu0 0.0
        %625 = vmatpush2.msra.mxu0 0.0
        %626 = vmatprep.subr.mxu0 0.0
        %627 = vmatpush2.msra.mxu0 0.0
        %628 = vmatprep.subr.mxu0 0.0
        %629 = vmatpush2.msra.mxu0 0.0
        %630 = vmatprep.subr.mxu0 0.0
        %631 = vmatpush2.msra.mxu0 0.0
        %632 = vmatprep.subr.mxu0 0.0
        %633 = vmatpush2.msra.mxu0 0.0
        %634 = vmatprep.subr.mxu0 0.0
        %635 = vmatpush2.msra.mxu0 0.0
        %636 = vmatprep.subr.mxu0 0.0
        %637 = vmatpush2.msra.mxu0 0.0
        %638 = vmatprep.subr.mxu0 0.0
        %639 = vmatpush2.msra.mxu0 0.0
        %640 = vmatprep.subr.mxu0 0.0
        %641 = vmatpush2.msra.mxu0 0.0
        %642 = vmatprep.subr.mxu0 0.0
        %643 = vmatpush2.msra.mxu0 0.0
        %644 = vmatprep.mubr.f32.mxu0 0.0
        %645 = vmatmul.mubr.f32.gmra.mxu0 %v578
        %v646 = vpop.f32.mrf.mxu0
        %v647 = vadd.f32 0.0, %v646
        %v648 = vpop.f32.mrf.mxu0
        %v649 = vadd.f32 0.0, %v648
        %650 = vdwg.mxu0
        %651 = vmatprep.subr.mxu0 0.0
        %652 = vmatpush1.msra.mxu0 0.0
        %653 = vmatprep.subr.mxu0 0.0
        %654 = vmatpush1.msra.mxu0 0.0
        %655 = vmatprep.subr.mxu0 0.0
        %656 = vmatpush1.msra.mxu0 0.0
        %657 = vmatprep.subr.mxu0 0.0
        %658 = vmatpush1.msra.mxu0 0.0
        %659 = vmatprep.subr.mxu0 0.0
        %660 = vmatpush1.msra.mxu0 0.0
        %661 = vmatprep.subr.mxu0 0.0
        %662 = vmatpush1.msra.mxu0 0.0
        %663 = vmatprep.subr.mxu0 0.0
        %664 = vmatpush1.msra.mxu0 0.0
        %665 = vmatprep.subr.mxu0 0.0
        %666 = vmatpush1.msra.mxu0 0.0
        %667 = vmatprep.subr.mxu0 0.0
        %668 = vmatpush1.msra.mxu0 0.0
        %669 = vmatprep.subr.mxu0 0.0
        %670 = vmatpush1.msra.mxu0 0.0
        %671 = vmatprep.subr.mxu0 0.0
        %672 = vmatpush1.msra.mxu0 0.0
        %673 = vmatprep.subr.mxu0 0.0
        %674 = vmatpush1.msra.mxu0 0.0
        %675 = vmatprep.subr.mxu0 0.0
        %676 = vmatpush1.msra.mxu0 0.0
        %677 = vmatprep.subr.mxu0 0.0
        %678 = vmatpush1.msra.mxu0 0.0
        %679 = vmatprep.subr.mxu0 0.0
        %680 = vmatpush1.msra.mxu0 0.0
        %681 = vmatprep.subr.mxu0 0.0
        %682 = vmatpush1.msra.mxu0 %v573
        %683 = vmatprep.subr.mxu0 0.0
        %684 = vmatpush2.msra.mxu0 0.0
        %685 = vmatprep.subr.mxu0 0.0
        %686 = vmatpush2.msra.mxu0 0.0
        %687 = vmatprep.subr.mxu0 0.0
        %688 = vmatpush2.msra.mxu0 0.0
        %689 = vmatprep.subr.mxu0 0.0
        %690 = vmatpush2.msra.mxu0 0.0
        %691 = vmatprep.subr.mxu0 0.0
        %692 = vmatpush2.msra.mxu0 0.0
        %693 = vmatprep.subr.mxu0 0.0
        %694 = vmatpush2.msra.mxu0 0.0
        %695 = vmatprep.subr.mxu0 0.0
        %696 = vmatpush2.msra.mxu0 0.0
        %697 = vmatprep.subr.mxu0 0.0
        %698 = vmatpush2.msra.mxu0 0.0
        %699 = vmatprep.subr.mxu0 0.0
        %700 = vmatpush2.msra.mxu0 0.0
        %701 = vmatprep.subr.mxu0 0.0
        %702 = vmatpush2.msra.mxu0 0.0
        %703 = vmatprep.subr.mxu0 0.0
        %704 = vmatpush2.msra.mxu0 0.0
        %705 = vmatprep.subr.mxu0 0.0
        %706 = vmatpush2.msra.mxu0 0.0
        %707 = vmatprep.subr.mxu0 0.0
        %708 = vmatpush2.msra.mxu0 0.0
        %709 = vmatprep.subr.mxu0 0.0
        %710 = vmatpush2.msra.mxu0 0.0
        %711 = vmatprep.subr.mxu0 0.0
        %712 = vmatpush2.msra.mxu0 0.0
        %713 = vmatprep.subr.mxu0 0.0
        %714 = vmatpush2.msra.mxu0 0.0
        %715 = vmatprep.mubr.f32.mxu0 0.0
        %716 = vmatmul.mubr.f32.gmra.mxu0 %v578
        %v717 = vpop.f32.mrf.mxu0
        %v718 = vadd.f32 0.0, %v717
        %v719 = vpop.f32.mrf.mxu0
        %720 = vdwg.mxu0
        %v721 = vadd.f32 %v486, %v647
        %v722 = vadd.f32 %v488, %v649
        %v723 = vadd.f32 %v557, %v718
        %s724 = scalar_lea.vmem %s0, 24
        %v725 = vld [vmem:[%s724] sm:$0xff]
        %726 = vrot.lane.b32.xlu0 %v245, 110
        %v727 = vpop.permute.xlu0 %726
        %728 = vrot.lane.b32.xlu0 %v246, 110
        %v729 = vpop.permute.xlu0 %728
        %730 = vrot.lane.b32.xlu0 %v247, 110
        %v731 = vpop.permute.xlu0 %730
        %732 = vrot.lane.b32.xlu0 %v248, 110
        %v733 = vpop.permute.xlu0 %732
        %vm734 = vcmask 900096
        %v735 = vsel %vm734, %v727, %v729
        %v736 = vsel %vm734, %v729, %v731
        %v737 = vsel %vm734, %v731, %v733
        %v742 = vsel %vm271, %v725, 0
        %744 = vmatprep.subr.mxu0 0.0
        %745 = vmatpush1.msra.mxu0 0.0
        %746 = vmatprep.subr.mxu0 0.0
        %747 = vmatpush1.msra.mxu0 0.0
        %748 = vmatprep.subr.mxu0 0.0
        %749 = vmatpush1.msra.mxu0 0.0
        %750 = vmatprep.subr.mxu0 0.0
        %751 = vmatpush1.msra.mxu0 0.0
        %752 = vmatprep.subr.mxu0 0.0
        %753 = vmatpush1.msra.mxu0 0.0
        %754 = vmatprep.subr.mxu0 0.0
        %755 = vmatpush1.msra.mxu0 0.0
        %756 = vmatprep.subr.mxu0 0.0
        %757 = vmatpush1.msra.mxu0 0.0
        %758 = vmatprep.subr.mxu0 0.0
        %759 = vmatpush1.msra.mxu0 0.0
        %760 = vmatprep.subr.mxu0 0.0
        %761 = vmatpush1.msra.mxu0 0.0
        %762 = vmatprep.subr.mxu0 0.0
        %763 = vmatpush1.msra.mxu0 0.0
        %764 = vmatprep.subr.mxu0 0.0
        %765 = vmatpush1.msra.mxu0 0.0
        %766 = vmatprep.subr.mxu0 0.0
        %767 = vmatpush1.msra.mxu0 0.0
        %768 = vmatprep.subr.mxu0 0.0
        %769 = vmatpush1.msra.mxu0 0.0
        %770 = vmatprep.subr.mxu0 0.0
        %771 = vmatpush1.msra.mxu0 0.0
        %772 = vmatprep.subr.mxu0 0.0
        %773 = vmatpush1.msra.mxu0 0.0
        %774 = vmatprep.subr.mxu0 %v736
        %775 = vmatpush1.msra.mxu0 %v735
        %776 = vmatprep.subr.mxu0 0.0
        %777 = vmatpush2.msra.mxu0 0.0
        %778 = vmatprep.subr.mxu0 0.0
        %779 = vmatpush2.msra.mxu0 0.0
        %780 = vmatprep.subr.mxu0 0.0
        %781 = vmatpush2.msra.mxu0 0.0
        %782 = vmatprep.subr.mxu0 0.0
        %783 = vmatpush2.msra.mxu0 0.0
        %784 = vmatprep.subr.mxu0 0.0
        %785 = vmatpush2.msra.mxu0 0.0
        %786 = vmatprep.subr.mxu0 0.0
        %787 = vmatpush2.msra.mxu0 0.0
        %788 = vmatprep.subr.mxu0 0.0
        %789 = vmatpush2.msra.mxu0 0.0
        %790 = vmatprep.subr.mxu0 0.0
        %791 = vmatpush2.msra.mxu0 0.0
        %792 = vmatprep.subr.mxu0 0.0
        %793 = vmatpush2.msra.mxu0 0.0
        %794 = vmatprep.subr.mxu0 0.0
        %795 = vmatpush2.msra.mxu0 0.0
        %796 = vmatprep.subr.mxu0 0.0
        %797 = vmatpush2.msra.mxu0 0.0
        %798 = vmatprep.subr.mxu0 0.0
        %799 = vmatpush2.msra.mxu0 0.0
        %800 = vmatprep.subr.mxu0 0.0
        %801 = vmatpush2.msra.mxu0 0.0
        %802 = vmatprep.subr.mxu0 0.0
        %803 = vmatpush2.msra.mxu0 0.0
        %804 = vmatprep.subr.mxu0 0.0
        %805 = vmatpush2.msra.mxu0 0.0
        %806 = vmatprep.subr.mxu0 0.0
        %807 = vmatpush2.msra.mxu0 0.0
        %808 = vmatprep.mubr.f32.mxu0 0.0
        %809 = vmatmul.mubr.f32.gmra.mxu0 %v742
        %v810 = vpop.f32.mrf.mxu0
        %v811 = vadd.f32 0.0, %v810
        %v812 = vpop.f32.mrf.mxu0
        %v813 = vadd.f32 0.0, %v812
        %814 = vdwg.mxu0
        %815 = vmatprep.subr.mxu0 0.0
        %816 = vmatpush1.msra.mxu0 0.0
        %817 = vmatprep.subr.mxu0 0.0
        %818 = vmatpush1.msra.mxu0 0.0
        %819 = vmatprep.subr.mxu0 0.0
        %820 = vmatpush1.msra.mxu0 0.0
        %821 = vmatprep.subr.mxu0 0.0
        %822 = vmatpush1.msra.mxu0 0.0
        %823 = vmatprep.subr.mxu0 0.0
        %824 = vmatpush1.msra.mxu0 0.0
        %825 = vmatprep.subr.mxu0 0.0
        %826 = vmatpush1.msra.mxu0 0.0
        %827 = vmatprep.subr.mxu0 0.0
        %828 = vmatpush1.msra.mxu0 0.0
        %829 = vmatprep.subr.mxu0 0.0
        %830 = vmatpush1.msra.mxu0 0.0
        %831 = vmatprep.subr.mxu0 0.0
        %832 = vmatpush1.msra.mxu0 0.0
        %833 = vmatprep.subr.mxu0 0.0
        %834 = vmatpush1.msra.mxu0 0.0
        %835 = vmatprep.subr.mxu0 0.0
        %836 = vmatpush1.msra.mxu0 0.0
        %837 = vmatprep.subr.mxu0 0.0
        %838 = vmatpush1.msra.mxu0 0.0
        %839 = vmatprep.subr.mxu0 0.0
        %840 = vmatpush1.msra.mxu0 0.0
        %841 = vmatprep.subr.mxu0 0.0
        %842 = vmatpush1.msra.mxu0 0.0
        %843 = vmatprep.subr.mxu0 0.0
        %844 = vmatpush1.msra.mxu0 0.0
        %845 = vmatprep.subr.mxu0 0.0
        %846 = vmatpush1.msra.mxu0 %v737
        %847 = vmatprep.subr.mxu0 0.0
        %848 = vmatpush2.msra.mxu0 0.0
        %849 = vmatprep.subr.mxu0 0.0
        %850 = vmatpush2.msra.mxu0 0.0
        %851 = vmatprep.subr.mxu0 0.0
        %852 = vmatpush2.msra.mxu0 0.0
        %853 = vmatprep.subr.mxu0 0.0
        %854 = vmatpush2.msra.mxu0 0.0
        %855 = vmatprep.subr.mxu0 0.0
        %856 = vmatpush2.msra.mxu0 0.0
        %857 = vmatprep.subr.mxu0 0.0
        %858 = vmatpush2.msra.mxu0 0.0
        %859 = vmatprep.subr.mxu0 0.0
        %860 = vmatpush2.msra.mxu0 0.0
        %861 = vmatprep.subr.mxu0 0.0
        %862 = vmatpush2.msra.mxu0 0.0
        %863 = vmatprep.subr.mxu0 0.0
        %864 = vmatpush2.msra.mxu0 0.0
        %865 = vmatprep.subr.mxu0 0.0
        %866 = vmatpush2.msra.mxu0 0.0
        %867 = vmatprep.subr.mxu0 0.0
        %868 = vmatpush2.msra.mxu0 0.0
        %869 = vmatprep.subr.mxu0 0.0
        %870 = vmatpush2.msra.mxu0 0.0
        %871 = vmatprep.subr.mxu0 0.0
        %872 = vmatpush2.msra.mxu0 0.0
        %873 = vmatprep.subr.mxu0 0.0
        %874 = vmatpush2.msra.mxu0 0.0
        %875 = vmatprep.subr.mxu0 0.0
        %876 = vmatpush2.msra.mxu0 0.0
        %877 = vmatprep.subr.mxu0 0.0
        %878 = vmatpush2.msra.mxu0 0.0
        %879 = vmatprep.mubr.f32.mxu0 0.0
        %880 = vmatmul.mubr.f32.gmra.mxu0 %v742
        %v881 = vpop.f32.mrf.mxu0
        %v882 = vadd.f32 0.0, %v881
        %v883 = vpop.f32.mrf.mxu0
        %884 = vdwg.mxu0
        %v885 = vadd.f32 %v721, %v811
        %v886 = vadd.f32 %v722, %v813
        %v887 = vadd.f32 %v723, %v882
        %s888 = scalar_lea.vmem %s0, 32
        %v889 = vld [vmem:[%s888] sm:$0xff]
        %890 = vrot.lane.b32.xlu0 %v245, 109
        %v891 = vpop.permute.xlu0 %890
        %892 = vrot.lane.b32.xlu0 %v246, 109
        %v893 = vpop.permute.xlu0 %892
        %894 = vrot.lane.b32.xlu0 %v247, 109
        %v895 = vpop.permute.xlu0 %894
        %896 = vrot.lane.b32.xlu0 %v248, 109
        %v897 = vpop.permute.xlu0 %896
        %vm898 = vcmask 891904
        %v899 = vsel %vm898, %v891, %v893
        %v900 = vsel %vm898, %v893, %v895
        %v901 = vsel %vm898, %v895, %v897
        %v906 = vsel %vm271, %v889, 0
        %908 = vmatprep.subr.mxu0 0.0
        %909 = vmatpush1.msra.mxu0 0.0
        %910 = vmatprep.subr.mxu0 0.0
        %911 = vmatpush1.msra.mxu0 0.0
        %912 = vmatprep.subr.mxu0 0.0
        %913 = vmatpush1.msra.mxu0 0.0
        %914 = vmatprep.subr.mxu0 0.0
        %915 = vmatpush1.msra.mxu0 0.0
        %916 = vmatprep.subr.mxu0 0.0
        %917 = vmatpush1.msra.mxu0 0.0
        %918 = vmatprep.subr.mxu0 0.0
        %919 = vmatpush1.msra.mxu0 0.0
        %920 = vmatprep.subr.mxu0 0.0
        %921 = vmatpush1.msra.mxu0 0.0
        %922 = vmatprep.subr.mxu0 0.0
        %923 = vmatpush1.msra.mxu0 0.0
        %924 = vmatprep.subr.mxu0 0.0
        %925 = vmatpush1.msra.mxu0 0.0
        %926 = vmatprep.subr.mxu0 0.0
        %927 = vmatpush1.msra.mxu0 0.0
        %928 = vmatprep.subr.mxu0 0.0
        %929 = vmatpush1.msra.mxu0 0.0
        %930 = vmatprep.subr.mxu0 0.0
        %931 = vmatpush1.msra.mxu0 0.0
        %932 = vmatprep.subr.mxu0 0.0
        %933 = vmatpush1.msra.mxu0 0.0
        %934 = vmatprep.subr.mxu0 0.0
        %935 = vmatpush1.msra.mxu0 0.0
        %936 = vmatprep.subr.mxu0 0.0
        %937 = vmatpush1.msra.mxu0 0.0
        %938 = vmatprep.subr.mxu0 %v900
        %939 = vmatpush1.msra.mxu0 %v899
        %940 = vmatprep.subr.mxu0 0.0
        %941 = vmatpush2.msra.mxu0 0.0
        %942 = vmatprep.subr.mxu0 0.0
        %943 = vmatpush2.msra.mxu0 0.0
        %944 = vmatprep.subr.mxu0 0.0
        %945 = vmatpush2.msra.mxu0 0.0
        %946 = vmatprep.subr.mxu0 0.0
        %947 = vmatpush2.msra.mxu0 0.0
        %948 = vmatprep.subr.mxu0 0.0
        %949 = vmatpush2.msra.mxu0 0.0
        %950 = vmatprep.subr.mxu0 0.0
        %951 = vmatpush2.msra.mxu0 0.0
        %952 = vmatprep.subr.mxu0 0.0
        %953 = vmatpush2.msra.mxu0 0.0
        %954 = vmatprep.subr.mxu0 0.0
        %955 = vmatpush2.msra.mxu0 0.0
        %956 = vmatprep.subr.mxu0 0.0
        %957 = vmatpush2.msra.mxu0 0.0
        %958 = vmatprep.subr.mxu0 0.0
        %959 = vmatpush2.msra.mxu0 0.0
        %960 = vmatprep.subr.mxu0 0.0
        %961 = vmatpush2.msra.mxu0 0.0
        %962 = vmatprep.subr.mxu0 0.0
        %963 = vmatpush2.msra.mxu0 0.0
        %964 = vmatprep.subr.mxu0 0.0
        %965 = vmatpush2.msra.mxu0 0.0
        %966 = vmatprep.subr.mxu0 0.0
        %967 = vmatpush2.msra.mxu0 0.0
        %968 = vmatprep.subr.mxu0 0.0
        %969 = vmatpush2.msra.mxu0 0.0
        %970 = vmatprep.subr.mxu0 0.0
        %971 = vmatpush2.msra.mxu0 0.0
        %972 = vmatprep.mubr.f32.mxu0 0.0
        %973 = vmatmul.mubr.f32.gmra.mxu0 %v906
        %v974 = vpop.f32.mrf.mxu0
        %v975 = vadd.f32 0.0, %v974
        %v976 = vpop.f32.mrf.mxu0
        %v977 = vadd.f32 0.0, %v976
        %978 = vdwg.mxu0
        %979 = vmatprep.subr.mxu0 0.0
        %980 = vmatpush1.msra.mxu0 0.0
        %981 = vmatprep.subr.mxu0 0.0
        %982 = vmatpush1.msra.mxu0 0.0
        %983 = vmatprep.subr.mxu0 0.0
        %984 = vmatpush1.msra.mxu0 0.0
        %985 = vmatprep.subr.mxu0 0.0
        %986 = vmatpush1.msra.mxu0 0.0
        %987 = vmatprep.subr.mxu0 0.0
        %988 = vmatpush1.msra.mxu0 0.0
        %989 = vmatprep.subr.mxu0 0.0
        %990 = vmatpush1.msra.mxu0 0.0
        %991 = vmatprep.subr.mxu0 0.0
        %992 = vmatpush1.msra.mxu0 0.0
        %993 = vmatprep.subr.mxu0 0.0
        %994 = vmatpush1.msra.mxu0 0.0
        %995 = vmatprep.subr.mxu0 0.0
        %996 = vmatpush1.msra.mxu0 0.0
        %997 = vmatprep.subr.mxu0 0.0
        %998 = vmatpush1.msra.mxu0 0.0
        %999 = vmatprep.subr.mxu0 0.0
        %1000 = vmatpush1.msra.mxu0 0.0
        %1001 = vmatprep.subr.mxu0 0.0
        %1002 = vmatpush1.msra.mxu0 0.0
        %1003 = vmatprep.subr.mxu0 0.0
        %1004 = vmatpush1.msra.mxu0 0.0
        %1005 = vmatprep.subr.mxu0 0.0
        %1006 = vmatpush1.msra.mxu0 0.0
        %1007 = vmatprep.subr.mxu0 0.0
        %1008 = vmatpush1.msra.mxu0 0.0
        %1009 = vmatprep.subr.mxu0 0.0
        %1010 = vmatpush1.msra.mxu0 %v901
        %1011 = vmatprep.subr.mxu0 0.0
        %1012 = vmatpush2.msra.mxu0 0.0
        %1013 = vmatprep.subr.mxu0 0.0
        %1014 = vmatpush2.msra.mxu0 0.0
        %1015 = vmatprep.subr.mxu0 0.0
        %1016 = vmatpush2.msra.mxu0 0.0
        %1017 = vmatprep.subr.mxu0 0.0
        %1018 = vmatpush2.msra.mxu0 0.0
        %1019 = vmatprep.subr.mxu0 0.0
        %1020 = vmatpush2.msra.mxu0 0.0
        %1021 = vmatprep.subr.mxu0 0.0
        %1022 = vmatpush2.msra.mxu0 0.0
        %1023 = vmatprep.subr.mxu0 0.0
        %1024 = vmatpush2.msra.mxu0 0.0
        %1025 = vmatprep.subr.mxu0 0.0
        %1026 = vmatpush2.msra.mxu0 0.0
        %1027 = vmatprep.subr.mxu0 0.0
        %1028 = vmatpush2.msra.mxu0 0.0
        %1029 = vmatprep.subr.mxu0 0.0
        %1030 = vmatpush2.msra.mxu0 0.0
        %1031 = vmatprep.subr.mxu0 0.0
        %1032 = vmatpush2.msra.mxu0 0.0
        %1033 = vmatprep.subr.mxu0 0.0
        %1034 = vmatpush2.msra.mxu0 0.0
        %1035 = vmatprep.subr.mxu0 0.0
        %1036 = vmatpush2.msra.mxu0 0.0
        %1037 = vmatprep.subr.mxu0 0.0
        %1038 = vmatpush2.msra.mxu0 0.0
        %1039 = vmatprep.subr.mxu0 0.0
        %1040 = vmatpush2.msra.mxu0 0.0
        %1041 = vmatprep.subr.mxu0 0.0
        %1042 = vmatpush2.msra.mxu0 0.0
        %1043 = vmatprep.mubr.f32.mxu0 0.0
        %1044 = vmatmul.mubr.f32.gmra.mxu0 %v906
        %v1045 = vpop.f32.mrf.mxu0
        %v1046 = vadd.f32 0.0, %v1045
        %v1047 = vpop.f32.mrf.mxu0
        %1048 = vdwg.mxu0
        %v1049 = vadd.f32 %v885, %v975
        %v1050 = vadd.f32 %v886, %v977
        %v1051 = vadd.f32 %v887, %v1046
        %s1052 = scalar_lea.vmem %s0, 40
        %v1053 = vld [vmem:[%s1052] sm:$0xff]
        %1054 = vrot.lane.b32.xlu0 %v245, 108
        %v1055 = vpop.permute.xlu0 %1054
        %1056 = vrot.lane.b32.xlu0 %v246, 108
        %v1057 = vpop.permute.xlu0 %1056
        %1058 = vrot.lane.b32.xlu0 %v247, 108
        %v1059 = vpop.permute.xlu0 %1058
        %1060 = vrot.lane.b32.xlu0 %v248, 108
        %v1061 = vpop.permute.xlu0 %1060
        %vm1062 = vcmask 883712
        %v1063 = vsel %vm1062, %v1055, %v1057
        %v1064 = vsel %vm1062, %v1057, %v1059
        %v1065 = vsel %vm1062, %v1059, %v1061
        %v1070 = vsel %vm271, %v1053, 0
        %1072 = vmatprep.subr.mxu0 0.0
        %1073 = vmatpush1.msra.mxu0 0.0
        %1074 = vmatprep.subr.mxu0 0.0
        %1075 = vmatpush1.msra.mxu0 0.0
        %1076 = vmatprep.subr.mxu0 0.0
        %1077 = vmatpush1.msra.mxu0 0.0
        %1078 = vmatprep.subr.mxu0 0.0
        %1079 = vmatpush1.msra.mxu0 0.0
        %1080 = vmatprep.subr.mxu0 0.0
        %1081 = vmatpush1.msra.mxu0 0.0
        %1082 = vmatprep.subr.mxu0 0.0
        %1083 = vmatpush1.msra.mxu0 0.0
        %1084 = vmatprep.subr.mxu0 0.0
        %1085 = vmatpush1.msra.mxu0 0.0
        %1086 = vmatprep.subr.mxu0 0.0
        %1087 = vmatpush1.msra.mxu0 0.0
        %1088 = vmatprep.subr.mxu0 0.0
        %1089 = vmatpush1.msra.mxu0 0.0
        %1090 = vmatprep.subr.mxu0 0.0
        %1091 = vmatpush1.msra.mxu0 0.0
        %1092 = vmatprep.subr.mxu0 0.0
        %1093 = vmatpush1.msra.mxu0 0.0
        %1094 = vmatprep.subr.mxu0 0.0
        %1095 = vmatpush1.msra.mxu0 0.0
        %1096 = vmatprep.subr.mxu0 0.0
        %1097 = vmatpush1.msra.mxu0 0.0
        %1098 = vmatprep.subr.mxu0 0.0
        %1099 = vmatpush1.msra.mxu0 0.0
        %1100 = vmatprep.subr.mxu0 0.0
        %1101 = vmatpush1.msra.mxu0 0.0
        %1102 = vmatprep.subr.mxu0 %v1064
        %1103 = vmatpush1.msra.mxu0 %v1063
        %1104 = vmatprep.subr.mxu0 0.0
        %1105 = vmatpush2.msra.mxu0 0.0
        %1106 = vmatprep.subr.mxu0 0.0
        %1107 = vmatpush2.msra.mxu0 0.0
        %1108 = vmatprep.subr.mxu0 0.0
        %1109 = vmatpush2.msra.mxu0 0.0
        %1110 = vmatprep.subr.mxu0 0.0
        %1111 = vmatpush2.msra.mxu0 0.0
        %1112 = vmatprep.subr.mxu0 0.0
        %1113 = vmatpush2.msra.mxu0 0.0
        %1114 = vmatprep.subr.mxu0 0.0
        %1115 = vmatpush2.msra.mxu0 0.0
        %1116 = vmatprep.subr.mxu0 0.0
        %1117 = vmatpush2.msra.mxu0 0.0
        %1118 = vmatprep.subr.mxu0 0.0
        %1119 = vmatpush2.msra.mxu0 0.0
        %1120 = vmatprep.subr.mxu0 0.0
        %1121 = vmatpush2.msra.mxu0 0.0
        %1122 = vmatprep.subr.mxu0 0.0
        %1123 = vmatpush2.msra.mxu0 0.0
        %1124 = vmatprep.subr.mxu0 0.0
        %1125 = vmatpush2.msra.mxu0 0.0
        %1126 = vmatprep.subr.mxu0 0.0
        %1127 = vmatpush2.msra.mxu0 0.0
        %1128 = vmatprep.subr.mxu0 0.0
        %1129 = vmatpush2.msra.mxu0 0.0
        %1130 = vmatprep.subr.mxu0 0.0
        %1131 = vmatpush2.msra.mxu0 0.0
        %1132 = vmatprep.subr.mxu0 0.0
        %1133 = vmatpush2.msra.mxu0 0.0
        %1134 = vmatprep.subr.mxu0 0.0
        %1135 = vmatpush2.msra.mxu0 0.0
        %1136 = vmatprep.mubr.f32.mxu0 0.0
        %1137 = vmatmul.mubr.f32.gmra.mxu0 %v1070
        %v1138 = vpop.f32.mrf.mxu0
        %v1139 = vadd.f32 0.0, %v1138
        %v1140 = vpop.f32.mrf.mxu0
        %v1141 = vadd.f32 0.0, %v1140
        %1142 = vdwg.mxu0
        %1143 = vmatprep.subr.mxu0 0.0
        %1144 = vmatpush1.msra.mxu0 0.0
        %1145 = vmatprep.subr.mxu0 0.0
        %1146 = vmatpush1.msra.mxu0 0.0
        %1147 = vmatprep.subr.mxu0 0.0
        %1148 = vmatpush1.msra.mxu0 0.0
        %1149 = vmatprep.subr.mxu0 0.0
        %1150 = vmatpush1.msra.mxu0 0.0
        %1151 = vmatprep.subr.mxu0 0.0
        %1152 = vmatpush1.msra.mxu0 0.0
        %1153 = vmatprep.subr.mxu0 0.0
        %1154 = vmatpush1.msra.mxu0 0.0
        %1155 = vmatprep.subr.mxu0 0.0
        %1156 = vmatpush1.msra.mxu0 0.0
        %1157 = vmatprep.subr.mxu0 0.0
        %1158 = vmatpush1.msra.mxu0 0.0
        %1159 = vmatprep.subr.mxu0 0.0
        %1160 = vmatpush1.msra.mxu0 0.0
        %1161 = vmatprep.subr.mxu0 0.0
        %1162 = vmatpush1.msra.mxu0 0.0
        %1163 = vmatprep.subr.mxu0 0.0
        %1164 = vmatpush1.msra.mxu0 0.0
        %1165 = vmatprep.subr.mxu0 0.0
        %1166 = vmatpush1.msra.mxu0 0.0
        %1167 = vmatprep.subr.mxu0 0.0
        %1168 = vmatpush1.msra.mxu0 0.0
        %1169 = vmatprep.subr.mxu0 0.0
        %1170 = vmatpush1.msra.mxu0 0.0
        %1171 = vmatprep.subr.mxu0 0.0
        %1172 = vmatpush1.msra.mxu0 0.0
        %1173 = vmatprep.subr.mxu0 0.0
        %1174 = vmatpush1.msra.mxu0 %v1065
        %1175 = vmatprep.subr.mxu0 0.0
        %1176 = vmatpush2.msra.mxu0 0.0
        %1177 = vmatprep.subr.mxu0 0.0
        %1178 = vmatpush2.msra.mxu0 0.0
        %1179 = vmatprep.subr.mxu0 0.0
        %1180 = vmatpush2.msra.mxu0 0.0
        %1181 = vmatprep.subr.mxu0 0.0
        %1182 = vmatpush2.msra.mxu0 0.0
        %1183 = vmatprep.subr.mxu0 0.0
        %1184 = vmatpush2.msra.mxu0 0.0
        %1185 = vmatprep.subr.mxu0 0.0
        %1186 = vmatpush2.msra.mxu0 0.0
        %1187 = vmatprep.subr.mxu0 0.0
        %1188 = vmatpush2.msra.mxu0 0.0
        %1189 = vmatprep.subr.mxu0 0.0
        %1190 = vmatpush2.msra.mxu0 0.0
        %1191 = vmatprep.subr.mxu0 0.0
        %1192 = vmatpush2.msra.mxu0 0.0
        %1193 = vmatprep.subr.mxu0 0.0
        %1194 = vmatpush2.msra.mxu0 0.0
        %1195 = vmatprep.subr.mxu0 0.0
        %1196 = vmatpush2.msra.mxu0 0.0
        %1197 = vmatprep.subr.mxu0 0.0
        %1198 = vmatpush2.msra.mxu0 0.0
        %1199 = vmatprep.subr.mxu0 0.0
        %1200 = vmatpush2.msra.mxu0 0.0
        %1201 = vmatprep.subr.mxu0 0.0
        %1202 = vmatpush2.msra.mxu0 0.0
        %1203 = vmatprep.subr.mxu0 0.0
        %1204 = vmatpush2.msra.mxu0 0.0
        %1205 = vmatprep.subr.mxu0 0.0
        %1206 = vmatpush2.msra.mxu0 0.0
        %1207 = vmatprep.mubr.f32.mxu0 0.0
        %1208 = vmatmul.mubr.f32.gmra.mxu0 %v1070
        %v1209 = vpop.f32.mrf.mxu0
        %v1210 = vadd.f32 0.0, %v1209
        %v1211 = vpop.f32.mrf.mxu0
        %1212 = vdwg.mxu0
        %v1213 = vadd.f32 %v1049, %v1139
        %v1214 = vadd.f32 %v1050, %v1141
        %v1215 = vadd.f32 %v1051, %v1210
        %s1216 = scalar_lea.vmem %s0, 48
        %v1217 = vld [vmem:[%s1216] sm:$0xff]
        %1218 = vrot.lane.b32.xlu0 %v245, 92
        %v1219 = vpop.permute.xlu0 %1218
        %1220 = vrot.lane.b32.xlu0 %v246, 92
        %v1221 = vpop.permute.xlu0 %1220
        %1222 = vrot.lane.b32.xlu0 %v247, 92
        %v1223 = vpop.permute.xlu0 %1222
        %1224 = vrot.lane.b32.xlu0 %v248, 92
        %v1225 = vpop.permute.xlu0 %1224
        %vm1226 = vcmask 752640
        %v1227 = vsel %vm1226, %v1219, %v1221
        %v1228 = vsel %vm1226, %v1221, %v1223
        %v1229 = vsel %vm1226, %v1223, %v1225
        %v1234 = vsel %vm271, %v1217, 0
        %1236 = vmatprep.subr.mxu0 0.0
        %1237 = vmatpush1.msra.mxu0 0.0
        %1238 = vmatprep.subr.mxu0 0.0
        %1239 = vmatpush1.msra.mxu0 0.0
        %1240 = vmatprep.subr.mxu0 0.0
        %1241 = vmatpush1.msra.mxu0 0.0
        %1242 = vmatprep.subr.mxu0 0.0
        %1243 = vmatpush1.msra.mxu0 0.0
        %1244 = vmatprep.subr.mxu0 0.0
        %1245 = vmatpush1.msra.mxu0 0.0
        %1246 = vmatprep.subr.mxu0 0.0
        %1247 = vmatpush1.msra.mxu0 0.0
        %1248 = vmatprep.subr.mxu0 0.0
        %1249 = vmatpush1.msra.mxu0 0.0
        %1250 = vmatprep.subr.mxu0 0.0
        %1251 = vmatpush1.msra.mxu0 0.0
        %1252 = vmatprep.subr.mxu0 0.0
        %1253 = vmatpush1.msra.mxu0 0.0
        %1254 = vmatprep.subr.mxu0 0.0
        %1255 = vmatpush1.msra.mxu0 0.0
        %1256 = vmatprep.subr.mxu0 0.0
        %1257 = vmatpush1.msra.mxu0 0.0
        %1258 = vmatprep.subr.mxu0 0.0
        %1259 = vmatpush1.msra.mxu0 0.0
        %1260 = vmatprep.subr.mxu0 0.0
        %1261 = vmatpush1.msra.mxu0 0.0
        %1262 = vmatprep.subr.mxu0 0.0
        %1263 = vmatpush1.msra.mxu0 0.0
        %1264 = vmatprep.subr.mxu0 0.0
        %1265 = vmatpush1.msra.mxu0 0.0
        %1266 = vmatprep.subr.mxu0 %v1228
        %1267 = vmatpush1.msra.mxu0 %v1227
        %1268 = vmatprep.subr.mxu0 0.0
        %1269 = vmatpush2.msra.mxu0 0.0
        %1270 = vmatprep.subr.mxu0 0.0
        %1271 = vmatpush2.msra.mxu0 0.0
        %1272 = vmatprep.subr.mxu0 0.0
        %1273 = vmatpush2.msra.mxu0 0.0
        %1274 = vmatprep.subr.mxu0 0.0
        %1275 = vmatpush2.msra.mxu0 0.0
        %1276 = vmatprep.subr.mxu0 0.0
        %1277 = vmatpush2.msra.mxu0 0.0
        %1278 = vmatprep.subr.mxu0 0.0
        %1279 = vmatpush2.msra.mxu0 0.0
        %1280 = vmatprep.subr.mxu0 0.0
        %1281 = vmatpush2.msra.mxu0 0.0
        %1282 = vmatprep.subr.mxu0 0.0
        %1283 = vmatpush2.msra.mxu0 0.0
        %1284 = vmatprep.subr.mxu0 0.0
        %1285 = vmatpush2.msra.mxu0 0.0
        %1286 = vmatprep.subr.mxu0 0.0
        %1287 = vmatpush2.msra.mxu0 0.0
        %1288 = vmatprep.subr.mxu0 0.0
        %1289 = vmatpush2.msra.mxu0 0.0
        %1290 = vmatprep.subr.mxu0 0.0
        %1291 = vmatpush2.msra.mxu0 0.0
        %1292 = vmatprep.subr.mxu0 0.0
        %1293 = vmatpush2.msra.mxu0 0.0
        %1294 = vmatprep.subr.mxu0 0.0
        %1295 = vmatpush2.msra.mxu0 0.0
        %1296 = vmatprep.subr.mxu0 0.0
        %1297 = vmatpush2.msra.mxu0 0.0
        %1298 = vmatprep.subr.mxu0 0.0
        %1299 = vmatpush2.msra.mxu0 0.0
        %1300 = vmatprep.mubr.f32.mxu0 0.0
        %1301 = vmatmul.mubr.f32.gmra.mxu0 %v1234
        %v1302 = vpop.f32.mrf.mxu0
        %v1303 = vadd.f32 0.0, %v1302
        %v1304 = vpop.f32.mrf.mxu0
        %v1305 = vadd.f32 0.0, %v1304
        %1306 = vdwg.mxu0
        %1307 = vmatprep.subr.mxu0 0.0
        %1308 = vmatpush1.msra.mxu0 0.0
        %1309 = vmatprep.subr.mxu0 0.0
        %1310 = vmatpush1.msra.mxu0 0.0
        %1311 = vmatprep.subr.mxu0 0.0
        %1312 = vmatpush1.msra.mxu0 0.0
        %1313 = vmatprep.subr.mxu0 0.0
        %1314 = vmatpush1.msra.mxu0 0.0
        %1315 = vmatprep.subr.mxu0 0.0
        %1316 = vmatpush1.msra.mxu0 0.0
        %1317 = vmatprep.subr.mxu0 0.0
        %1318 = vmatpush1.msra.mxu0 0.0
        %1319 = vmatprep.subr.mxu0 0.0
        %1320 = vmatpush1.msra.mxu0 0.0
        %1321 = vmatprep.subr.mxu0 0.0
        %1322 = vmatpush1.msra.mxu0 0.0
        %1323 = vmatprep.subr.mxu0 0.0
        %1324 = vmatpush1.msra.mxu0 0.0
        %1325 = vmatprep.subr.mxu0 0.0
        %1326 = vmatpush1.msra.mxu0 0.0
        %1327 = vmatprep.subr.mxu0 0.0
        %1328 = vmatpush1.msra.mxu0 0.0
        %1329 = vmatprep.subr.mxu0 0.0
        %1330 = vmatpush1.msra.mxu0 0.0
        %1331 = vmatprep.subr.mxu0 0.0
        %1332 = vmatpush1.msra.mxu0 0.0
        %1333 = vmatprep.subr.mxu0 0.0
        %1334 = vmatpush1.msra.mxu0 0.0
        %1335 = vmatprep.subr.mxu0 0.0
        %1336 = vmatpush1.msra.mxu0 0.0
        %1337 = vmatprep.subr.mxu0 0.0
        %1338 = vmatpush1.msra.mxu0 %v1229
        %1339 = vmatprep.subr.mxu0 0.0
        %1340 = vmatpush2.msra.mxu0 0.0
        %1341 = vmatprep.subr.mxu0 0.0
        %1342 = vmatpush2.msra.mxu0 0.0
        %1343 = vmatprep.subr.mxu0 0.0
        %1344 = vmatpush2.msra.mxu0 0.0
        %1345 = vmatprep.subr.mxu0 0.0
        %1346 = vmatpush2.msra.mxu0 0.0
        %1347 = vmatprep.subr.mxu0 0.0
        %1348 = vmatpush2.msra.mxu0 0.0
        %1349 = vmatprep.subr.mxu0 0.0
        %1350 = vmatpush2.msra.mxu0 0.0
        %1351 = vmatprep.subr.mxu0 0.0
        %1352 = vmatpush2.msra.mxu0 0.0
        %1353 = vmatprep.subr.mxu0 0.0
        %1354 = vmatpush2.msra.mxu0 0.0
        %1355 = vmatprep.subr.mxu0 0.0
        %1356 = vmatpush2.msra.mxu0 0.0
        %1357 = vmatprep.subr.mxu0 0.0
        %1358 = vmatpush2.msra.mxu0 0.0
        %1359 = vmatprep.subr.mxu0 0.0
        %1360 = vmatpush2.msra.mxu0 0.0
        %1361 = vmatprep.subr.mxu0 0.0
        %1362 = vmatpush2.msra.mxu0 0.0
        %1363 = vmatprep.subr.mxu0 0.0
        %1364 = vmatpush2.msra.mxu0 0.0
        %1365 = vmatprep.subr.mxu0 0.0
        %1366 = vmatpush2.msra.mxu0 0.0
        %1367 = vmatprep.subr.mxu0 0.0
        %1368 = vmatpush2.msra.mxu0 0.0
        %1369 = vmatprep.subr.mxu0 0.0
        %1370 = vmatpush2.msra.mxu0 0.0
        %1371 = vmatprep.mubr.f32.mxu0 0.0
        %1372 = vmatmul.mubr.f32.gmra.mxu0 %v1234
        %v1373 = vpop.f32.mrf.mxu0
        %v1374 = vadd.f32 0.0, %v1373
        %v1375 = vpop.f32.mrf.mxu0
        %1376 = vdwg.mxu0
        %v1377 = vadd.f32 %v1213, %v1303
        %v1378 = vadd.f32 %v1214, %v1305
        %v1379 = vadd.f32 %v1215, %v1374
        %s1380 = scalar_lea.vmem %s0, 56
        %v1381 = vld [vmem:[%s1380] sm:$0xff]
        %1382 = vrot.lane.b32.xlu0 %v245, 91
        %v1383 = vpop.permute.xlu0 %1382
        %1384 = vrot.lane.b32.xlu0 %v246, 91
        %v1385 = vpop.permute.xlu0 %1384
        %1386 = vrot.lane.b32.xlu0 %v247, 91
        %v1387 = vpop.permute.xlu0 %1386
        %1388 = vrot.lane.b32.xlu0 %v248, 91
        %v1389 = vpop.permute.xlu0 %1388
        %vm1390 = vcmask 744448
        %v1391 = vsel %vm1390, %v1383, %v1385
        %v1392 = vsel %vm1390, %v1385, %v1387
        %v1393 = vsel %vm1390, %v1387, %v1389
        %v1398 = vsel %vm271, %v1381, 0
        %1400 = vmatprep.subr.mxu0 0.0
        %1401 = vmatpush1.msra.mxu0 0.0
        %1402 = vmatprep.subr.mxu0 0.0
        %1403 = vmatpush1.msra.mxu0 0.0
        %1404 = vmatprep.subr.mxu0 0.0
        %1405 = vmatpush1.msra.mxu0 0.0
        %1406 = vmatprep.subr.mxu0 0.0
        %1407 = vmatpush1.msra.mxu0 0.0
        %1408 = vmatprep.subr.mxu0 0.0
        %1409 = vmatpush1.msra.mxu0 0.0
        %1410 = vmatprep.subr.mxu0 0.0
        %1411 = vmatpush1.msra.mxu0 0.0
        %1412 = vmatprep.subr.mxu0 0.0
        %1413 = vmatpush1.msra.mxu0 0.0
        %1414 = vmatprep.subr.mxu0 0.0
        %1415 = vmatpush1.msra.mxu0 0.0
        %1416 = vmatprep.subr.mxu0 0.0
        %1417 = vmatpush1.msra.mxu0 0.0
        %1418 = vmatprep.subr.mxu0 0.0
        %1419 = vmatpush1.msra.mxu0 0.0
        %1420 = vmatprep.subr.mxu0 0.0
        %1421 = vmatpush1.msra.mxu0 0.0
        %1422 = vmatprep.subr.mxu0 0.0
        %1423 = vmatpush1.msra.mxu0 0.0
        %1424 = vmatprep.subr.mxu0 0.0
        %1425 = vmatpush1.msra.mxu0 0.0
        %1426 = vmatprep.subr.mxu0 0.0
        %1427 = vmatpush1.msra.mxu0 0.0
        %1428 = vmatprep.subr.mxu0 0.0
        %1429 = vmatpush1.msra.mxu0 0.0
        %1430 = vmatprep.subr.mxu0 %v1392
        %1431 = vmatpush1.msra.mxu0 %v1391
        %1432 = vmatprep.subr.mxu0 0.0
        %1433 = vmatpush2.msra.mxu0 0.0
        %1434 = vmatprep.subr.mxu0 0.0
        %1435 = vmatpush2.msra.mxu0 0.0
        %1436 = vmatprep.subr.mxu0 0.0
        %1437 = vmatpush2.msra.mxu0 0.0
        %1438 = vmatprep.subr.mxu0 0.0
        %1439 = vmatpush2.msra.mxu0 0.0
        %1440 = vmatprep.subr.mxu0 0.0
        %1441 = vmatpush2.msra.mxu0 0.0
        %1442 = vmatprep.subr.mxu0 0.0
        %1443 = vmatpush2.msra.mxu0 0.0
        %1444 = vmatprep.subr.mxu0 0.0
        %1445 = vmatpush2.msra.mxu0 0.0
        %1446 = vmatprep.subr.mxu0 0.0
        %1447 = vmatpush2.msra.mxu0 0.0
        %1448 = vmatprep.subr.mxu0 0.0
        %1449 = vmatpush2.msra.mxu0 0.0
        %1450 = vmatprep.subr.mxu0 0.0
        %1451 = vmatpush2.msra.mxu0 0.0
        %1452 = vmatprep.subr.mxu0 0.0
        %1453 = vmatpush2.msra.mxu0 0.0
        %1454 = vmatprep.subr.mxu0 0.0
        %1455 = vmatpush2.msra.mxu0 0.0
        %1456 = vmatprep.subr.mxu0 0.0
        %1457 = vmatpush2.msra.mxu0 0.0
        %1458 = vmatprep.subr.mxu0 0.0
        %1459 = vmatpush2.msra.mxu0 0.0
        %1460 = vmatprep.subr.mxu0 0.0
        %1461 = vmatpush2.msra.mxu0 0.0
        %1462 = vmatprep.subr.mxu0 0.0
        %1463 = vmatpush2.msra.mxu0 0.0
        %1464 = vmatprep.mubr.f32.mxu0 0.0
        %1465 = vmatmul.mubr.f32.gmra.mxu0 %v1398
        %v1466 = vpop.f32.mrf.mxu0
        %v1467 = vadd.f32 0.0, %v1466
        %v1468 = vpop.f32.mrf.mxu0
        %v1469 = vadd.f32 0.0, %v1468
        %1470 = vdwg.mxu0
        %1471 = vmatprep.subr.mxu0 0.0
        %1472 = vmatpush1.msra.mxu0 0.0
        %1473 = vmatprep.subr.mxu0 0.0
        %1474 = vmatpush1.msra.mxu0 0.0
        %1475 = vmatprep.subr.mxu0 0.0
        %1476 = vmatpush1.msra.mxu0 0.0
        %1477 = vmatprep.subr.mxu0 0.0
        %1478 = vmatpush1.msra.mxu0 0.0
        %1479 = vmatprep.subr.mxu0 0.0
        %1480 = vmatpush1.msra.mxu0 0.0
        %1481 = vmatprep.subr.mxu0 0.0
        %1482 = vmatpush1.msra.mxu0 0.0
        %1483 = vmatprep.subr.mxu0 0.0
        %1484 = vmatpush1.msra.mxu0 0.0
        %1485 = vmatprep.subr.mxu0 0.0
        %1486 = vmatpush1.msra.mxu0 0.0
        %1487 = vmatprep.subr.mxu0 0.0
        %1488 = vmatpush1.msra.mxu0 0.0
        %1489 = vmatprep.subr.mxu0 0.0
        %1490 = vmatpush1.msra.mxu0 0.0
        %1491 = vmatprep.subr.mxu0 0.0
        %1492 = vmatpush1.msra.mxu0 0.0
        %1493 = vmatprep.subr.mxu0 0.0
        %1494 = vmatpush1.msra.mxu0 0.0
        %1495 = vmatprep.subr.mxu0 0.0
        %1496 = vmatpush1.msra.mxu0 0.0
        %1497 = vmatprep.subr.mxu0 0.0
        %1498 = vmatpush1.msra.mxu0 0.0
        %1499 = vmatprep.subr.mxu0 0.0
        %1500 = vmatpush1.msra.mxu0 0.0
        %1501 = vmatprep.subr.mxu0 0.0
        %1502 = vmatpush1.msra.mxu0 %v1393
        %1503 = vmatprep.subr.mxu0 0.0
        %1504 = vmatpush2.msra.mxu0 0.0
        %1505 = vmatprep.subr.mxu0 0.0
        %1506 = vmatpush2.msra.mxu0 0.0
        %1507 = vmatprep.subr.mxu0 0.0
        %1508 = vmatpush2.msra.mxu0 0.0
        %1509 = vmatprep.subr.mxu0 0.0
        %1510 = vmatpush2.msra.mxu0 0.0
        %1511 = vmatprep.subr.mxu0 0.0
        %1512 = vmatpush2.msra.mxu0 0.0
        %1513 = vmatprep.subr.mxu0 0.0
        %1514 = vmatpush2.msra.mxu0 0.0
        %1515 = vmatprep.subr.mxu0 0.0
        %1516 = vmatpush2.msra.mxu0 0.0
        %1517 = vmatprep.subr.mxu0 0.0
        %1518 = vmatpush2.msra.mxu0 0.0
        %1519 = vmatprep.subr.mxu0 0.0
        %1520 = vmatpush2.msra.mxu0 0.0
        %1521 = vmatprep.subr.mxu0 0.0
        %1522 = vmatpush2.msra.mxu0 0.0
        %1523 = vmatprep.subr.mxu0 0.0
        %1524 = vmatpush2.msra.mxu0 0.0
        %1525 = vmatprep.subr.mxu0 0.0
        %1526 = vmatpush2.msra.mxu0 0.0
        %1527 = vmatprep.subr.mxu0 0.0
        %1528 = vmatpush2.msra.mxu0 0.0
        %1529 = vmatprep.subr.mxu0 0.0
        %1530 = vmatpush2.msra.mxu0 0.0
        %1531 = vmatprep.subr.mxu0 0.0
        %1532 = vmatpush2.msra.mxu0 0.0
        %1533 = vmatprep.subr.mxu0 0.0
        %1534 = vmatpush2.msra.mxu0 0.0
        %1535 = vmatprep.mubr.f32.mxu0 0.0
        %1536 = vmatmul.mubr.f32.gmra.mxu0 %v1398
        %v1537 = vpop.f32.mrf.mxu0
        %v1538 = vadd.f32 0.0, %v1537
        %v1539 = vpop.f32.mrf.mxu0
        %1540 = vdwg.mxu0
        %v1541 = vadd.f32 %v1377, %v1467
        %v1542 = vadd.f32 %v1378, %v1469
        %v1543 = vadd.f32 %v1379, %v1538
        %s1544 = scalar_lea.vmem %s0, 64
        %v1545 = vld [vmem:[%s1544] sm:$0xff]
        %1546 = vrot.lane.b32.xlu0 %v245, 90
        %v1547 = vpop.permute.xlu0 %1546
        %1548 = vrot.lane.b32.xlu0 %v246, 90
        %v1549 = vpop.permute.xlu0 %1548
        %1550 = vrot.lane.b32.xlu0 %v247, 90
        %v1551 = vpop.permute.xlu0 %1550
        %1552 = vrot.lane.b32.xlu0 %v248, 90
        %v1553 = vpop.permute.xlu0 %1552
        %vm1554 = vcmask 736256
        %v1555 = vsel %vm1554, %v1547, %v1549
        %v1556 = vsel %vm1554, %v1549, %v1551
        %v1557 = vsel %vm1554, %v1551, %v1553
        %v1562 = vsel %vm271, %v1545, 0
        %1564 = vmatprep.subr.mxu0 0.0
        %1565 = vmatpush1.msra.mxu0 0.0
        %1566 = vmatprep.subr.mxu0 0.0
        %1567 = vmatpush1.msra.mxu0 0.0
        %1568 = vmatprep.subr.mxu0 0.0
        %1569 = vmatpush1.msra.mxu0 0.0
        %1570 = vmatprep.subr.mxu0 0.0
        %1571 = vmatpush1.msra.mxu0 0.0
        %1572 = vmatprep.subr.mxu0 0.0
        %1573 = vmatpush1.msra.mxu0 0.0
        %1574 = vmatprep.subr.mxu0 0.0
        %1575 = vmatpush1.msra.mxu0 0.0
        %1576 = vmatprep.subr.mxu0 0.0
        %1577 = vmatpush1.msra.mxu0 0.0
        %1578 = vmatprep.subr.mxu0 0.0
        %1579 = vmatpush1.msra.mxu0 0.0
        %1580 = vmatprep.subr.mxu0 0.0
        %1581 = vmatpush1.msra.mxu0 0.0
        %1582 = vmatprep.subr.mxu0 0.0
        %1583 = vmatpush1.msra.mxu0 0.0
        %1584 = vmatprep.subr.mxu0 0.0
        %1585 = vmatpush1.msra.mxu0 0.0
        %1586 = vmatprep.subr.mxu0 0.0
        %1587 = vmatpush1.msra.mxu0 0.0
        %1588 = vmatprep.subr.mxu0 0.0
        %1589 = vmatpush1.msra.mxu0 0.0
        %1590 = vmatprep.subr.mxu0 0.0
        %1591 = vmatpush1.msra.mxu0 0.0
        %1592 = vmatprep.subr.mxu0 0.0
        %1593 = vmatpush1.msra.mxu0 0.0
        %1594 = vmatprep.subr.mxu0 %v1556
        %1595 = vmatpush1.msra.mxu0 %v1555
        %1596 = vmatprep.subr.mxu0 0.0
        %1597 = vmatpush2.msra.mxu0 0.0
        %1598 = vmatprep.subr.mxu0 0.0
        %1599 = vmatpush2.msra.mxu0 0.0
        %1600 = vmatprep.subr.mxu0 0.0
        %1601 = vmatpush2.msra.mxu0 0.0
        %1602 = vmatprep.subr.mxu0 0.0
        %1603 = vmatpush2.msra.mxu0 0.0
        %1604 = vmatprep.subr.mxu0 0.0
        %1605 = vmatpush2.msra.mxu0 0.0
        %1606 = vmatprep.subr.mxu0 0.0
        %1607 = vmatpush2.msra.mxu0 0.0
        %1608 = vmatprep.subr.mxu0 0.0
        %1609 = vmatpush2.msra.mxu0 0.0
        %1610 = vmatprep.subr.mxu0 0.0
        %1611 = vmatpush2.msra.mxu0 0.0
        %1612 = vmatprep.subr.mxu0 0.0
        %1613 = vmatpush2.msra.mxu0 0.0
        %1614 = vmatprep.subr.mxu0 0.0
        %1615 = vmatpush2.msra.mxu0 0.0
        %1616 = vmatprep.subr.mxu0 0.0
        %1617 = vmatpush2.msra.mxu0 0.0
        %1618 = vmatprep.subr.mxu0 0.0
        %1619 = vmatpush2.msra.mxu0 0.0
        %1620 = vmatprep.subr.mxu0 0.0
        %1621 = vmatpush2.msra.mxu0 0.0
        %1622 = vmatprep.subr.mxu0 0.0
        %1623 = vmatpush2.msra.mxu0 0.0
        %1624 = vmatprep.subr.mxu0 0.0
        %1625 = vmatpush2.msra.mxu0 0.0
        %1626 = vmatprep.subr.mxu0 0.0
        %1627 = vmatpush2.msra.mxu0 0.0
        %1628 = vmatprep.mubr.f32.mxu0 0.0
        %1629 = vmatmul.mubr.f32.gmra.mxu0 %v1562
        %v1630 = vpop.f32.mrf.mxu0
        %v1631 = vadd.f32 0.0, %v1630
        %v1632 = vpop.f32.mrf.mxu0
        %v1633 = vadd.f32 0.0, %v1632
        %1634 = vdwg.mxu0
        %1635 = vmatprep.subr.mxu0 0.0
        %1636 = vmatpush1.msra.mxu0 0.0
        %1637 = vmatprep.subr.mxu0 0.0
        %1638 = vmatpush1.msra.mxu0 0.0
        %1639 = vmatprep.subr.mxu0 0.0
        %1640 = vmatpush1.msra.mxu0 0.0
        %1641 = vmatprep.subr.mxu0 0.0
        %1642 = vmatpush1.msra.mxu0 0.0
        %1643 = vmatprep.subr.mxu0 0.0
        %1644 = vmatpush1.msra.mxu0 0.0
        %1645 = vmatprep.subr.mxu0 0.0
        %1646 = vmatpush1.msra.mxu0 0.0
        %1647 = vmatprep.subr.mxu0 0.0
        %1648 = vmatpush1.msra.mxu0 0.0
        %1649 = vmatprep.subr.mxu0 0.0
        %1650 = vmatpush1.msra.mxu0 0.0
        %1651 = vmatprep.subr.mxu0 0.0
        %1652 = vmatpush1.msra.mxu0 0.0
        %1653 = vmatprep.subr.mxu0 0.0
        %1654 = vmatpush1.msra.mxu0 0.0
        %1655 = vmatprep.subr.mxu0 0.0
        %1656 = vmatpush1.msra.mxu0 0.0
        %1657 = vmatprep.subr.mxu0 0.0
        %1658 = vmatpush1.msra.mxu0 0.0
        %1659 = vmatprep.subr.mxu0 0.0
        %1660 = vmatpush1.msra.mxu0 0.0
        %1661 = vmatprep.subr.mxu0 0.0
        %1662 = vmatpush1.msra.mxu0 0.0
        %1663 = vmatprep.subr.mxu0 0.0
        %1664 = vmatpush1.msra.mxu0 0.0
        %1665 = vmatprep.subr.mxu0 0.0
        %1666 = vmatpush1.msra.mxu0 %v1557
        %1667 = vmatprep.subr.mxu0 0.0
        %1668 = vmatpush2.msra.mxu0 0.0
        %1669 = vmatprep.subr.mxu0 0.0
        %1670 = vmatpush2.msra.mxu0 0.0
        %1671 = vmatprep.subr.mxu0 0.0
        %1672 = vmatpush2.msra.mxu0 0.0
        %1673 = vmatprep.subr.mxu0 0.0
        %1674 = vmatpush2.msra.mxu0 0.0
        %1675 = vmatprep.subr.mxu0 0.0
        %1676 = vmatpush2.msra.mxu0 0.0
        %1677 = vmatprep.subr.mxu0 0.0
        %1678 = vmatpush2.msra.mxu0 0.0
        %1679 = vmatprep.subr.mxu0 0.0
        %1680 = vmatpush2.msra.mxu0 0.0
        %1681 = vmatprep.subr.mxu0 0.0
        %1682 = vmatpush2.msra.mxu0 0.0
        %1683 = vmatprep.subr.mxu0 0.0
        %1684 = vmatpush2.msra.mxu0 0.0
        %1685 = vmatprep.subr.mxu0 0.0
        %1686 = vmatpush2.msra.mxu0 0.0
        %1687 = vmatprep.subr.mxu0 0.0
        %1688 = vmatpush2.msra.mxu0 0.0
        %1689 = vmatprep.subr.mxu0 0.0
        %1690 = vmatpush2.msra.mxu0 0.0
        %1691 = vmatprep.subr.mxu0 0.0
        %1692 = vmatpush2.msra.mxu0 0.0
        %1693 = vmatprep.subr.mxu0 0.0
        %1694 = vmatpush2.msra.mxu0 0.0
        %1695 = vmatprep.subr.mxu0 0.0
        %1696 = vmatpush2.msra.mxu0 0.0
        %1697 = vmatprep.subr.mxu0 0.0
        %1698 = vmatpush2.msra.mxu0 0.0
        %1699 = vmatprep.mubr.f32.mxu0 0.0
        %1700 = vmatmul.mubr.f32.gmra.mxu0 %v1562
        %v1701 = vpop.f32.mrf.mxu0
        %v1702 = vadd.f32 0.0, %v1701
        %v1703 = vpop.f32.mrf.mxu0
        %1704 = vdwg.mxu0
        %v1705 = vadd.f32 %v1541, %v1631
        %v1706 = vadd.f32 %v1542, %v1633
        %v1707 = vadd.f32 %v1543, %v1702
        %v1708 = vld [vmem:[%s2] sm:$0xff]
        %1710 = vset.pattern.permute.xlu0 0
        %1711 = vperm.xlu0 %1710, %v1708
        %v1712 = vpop.permute.xlu0 %1711
        %v1714 = vadd.f32 %v1705, %v1712
        %v1715 = vadd.f32 %v1706, %v1712
        %v1716 = vadd.f32 %v1707, %v1712
        %v1717 = vrot.slane %v1714, 4
        %v1718 = vadd.f32 %v1714, %v1717
        %v1719 = vrot.slane %v1718, 2
        %v1720 = vadd.f32 %v1718, %v1719
        %v1721 = vrot.slane %v1720, 1
        %v1722 = vadd.f32 %v1720, %v1721
        %v1723 = vrot.slane %v1715, 4
        %v1724 = vadd.f32 %v1715, %v1723
        %v1725 = vrot.slane %v1724, 2
        %v1726 = vadd.f32 %v1724, %v1725
        %v1727 = vrot.slane %v1726, 1
        %v1728 = vadd.f32 %v1726, %v1727
        %v1729 = vrot.slane %v1716, 4
        %v1730 = vadd.f32 %v1716, %v1729
        %v1731 = vrot.slane %v1730, 2
        %v1732 = vadd.f32 %v1730, %v1731
        %v1733 = vrot.slane %v1732, 1
        %v1734 = vadd.f32 %v1732, %v1733
        %v1735 = vrcp.pop 8.0
        %v1736 = vmul.f32 %v1722, %v1735
        %v1737 = vmul.f32 %v1728, %v1735
        %v1738 = vmul.f32 %v1734, %v1735
        %v1739 = vsub.f32 %v1714, %v1736
        %v1740 = vsub.f32 %v1715, %v1737
        %v1741 = vsub.f32 %v1716, %v1738
        %v1742 = vmul.f32 %v1739, %v1739
        %v1743 = vmul.f32 %v1740, %v1740
        %v1744 = vmul.f32 %v1741, %v1741
        %v1745 = vrot.slane %v1742, 4
        %v1746 = vadd.f32 %v1742, %v1745
        %v1747 = vrot.slane %v1746, 2
        %v1748 = vadd.f32 %v1746, %v1747
        %v1749 = vrot.slane %v1748, 1
        %v1750 = vadd.f32 %v1748, %v1749
        %v1751 = vrot.slane %v1743, 4
        %v1752 = vadd.f32 %v1743, %v1751
        %v1753 = vrot.slane %v1752, 2
        %v1754 = vadd.f32 %v1752, %v1753
        %v1755 = vrot.slane %v1754, 1
        %v1756 = vadd.f32 %v1754, %v1755
        %v1757 = vrot.slane %v1744, 4
        %v1758 = vadd.f32 %v1744, %v1757
        %v1759 = vrot.slane %v1758, 2
        %v1760 = vadd.f32 %v1758, %v1759
        %v1761 = vrot.slane %v1760, 1
        %v1762 = vadd.f32 %v1760, %v1761
        %v1763 = vmul.f32 %v1750, %v1735
        %v1764 = vmul.f32 %v1756, %v1735
        %v1765 = vmul.f32 %v1762, %v1735
        %v1766 = vadd.f32 %v1763, 1e-06
        %v1767 = vadd.f32 %v1764, 1e-06
        %v1768 = vadd.f32 %v1765, 1e-06
        %v1769 = vrsqrt.pop %v1766
        %v1770 = vrsqrt.pop %v1767
        %v1771 = vrsqrt.pop %v1768
        %v1772 = vmul.f32 %v1739, %v1769
        %v1773 = vmul.f32 %v1740, %v1770
        %v1774 = vmul.f32 %v1741, %v1771
        %v1775 = vld [vmem:[%s3] sm:$0xff]
        %1777 = vset.pattern.permute.xlu0 0
        %1778 = vperm.xlu0 %1777, %v1775
        %v1779 = vpop.permute.xlu0 %1778
        %v1781 = vmul.f32 %v1779, %v1772
        %v1782 = vmul.f32 %v1779, %v1773
        %v1783 = vmul.f32 %v1779, %v1774
        %v1784 = vld [vmem:[%s4] sm:$0xff]
        %1786 = vset.pattern.permute.xlu0 0
        %1787 = vperm.xlu0 %1786, %v1784
        %v1788 = vpop.permute.xlu0 %1787
        %v1790 = vadd.f32 %v1781, %v1788
        %v1791 = vadd.f32 %v1782, %v1788
        %v1792 = vadd.f32 %v1783, %v1788
        %v1793 = vxor.u32 %v1790, 2147483648
        %v1794 = vxor.u32 %v1791, 2147483648
        %v1795 = vxor.u32 %v1792, 2147483648
        %v1796 = vmul.f32 %v1793, 1.442695
        %v1797 = vpow.pop %v1796
        %v1798 = vmul.f32 %v1794, 1.442695
        %v1799 = vpow.pop %v1798
        %v1800 = vmul.f32 %v1795, 1.442695
        %v1801 = vpow.pop %v1800
        %v1802 = vadd.f32 %v1797, 1.0
        %v1803 = vadd.f32 %v1799, 1.0
        %v1804 = vadd.f32 %v1801, 1.0
        %v1805 = vrcp.pop %v1802
        %v1806 = vmul.f32 1.0, %v1805
        %v1807 = vrcp.pop %v1803
        %v1808 = vmul.f32 1.0, %v1807
        %v1809 = vrcp.pop %v1804
        %v1810 = vmul.f32 1.0, %v1809
        %v1811 = vmul.f32 %v1790, %v1806
        %v1812 = vmul.f32 %v1791, %v1808
        %v1813 = vmul.f32 %v1792, %v1810
        %1814 = vst [vmem:[%s236] sm:$0xff] %v1811
        %1815 = vst [vmem:[%s236 + $0x8] sm:$0xff] %v1812
        %1816 = vst [vmem:[%s236 + $0x10] sm:$0xff] %v1813
        %s1817 = sand.u32 %s153, 1
        %s1818 = scalar_lea.sflag [#allocation3], %s1817
        %s1819 = sand.u32 %s153, 1
        %s1820 = smul.addr %s1819, 24
        %s1821 = scalar_lea.vmem [#allocation2], %s1820
        // Predicated region
        $region41: #{tpu_custom_call.1} parent=39 // pred_check
          %p1822 = pneg %p163
        $region42: #{tpu_custom_call.1} parent=39 // pred_check_branch
          %1824 = sbr.rel (%p1822) target = $region44
        $region43: #{tpu_custom_call.1} parent=39 // pred_region
          %s1825 = smul.u32 3, %s24
          %s1827 = ssub.s32 384, 384
          %1828 = vsyncadd %s1818, %s1827
          %s1829 = smul.addr %s23, 3
          %s1830 = sadd.s32 %s1825, %s1829
          %s1831 = smul.addr %s1830, 128
          %s1832 = scalar_lea.hbm %s5, %s1831
          %s1834 = sshll.u32 %s1821, 4
          %s1835 = int_to_ptr.vmem [resolvable:$true] %s1834
          %1837 = dma.vmem_to_hbm [thread:$0]  %s1835, 384, %s1832, %s1818
        $region44: #{tpu_custom_call.1} parent=39 // pred_fallthru
          _
      $region40: #{tpu_custom_call.1} parent=5 // pred_fallthru
        _
      %p1838 = scmp.le.s32.totalorder 2, %s14
      // Predicated region
      $region45: #{tpu_custom_call.1} parent=5 // pred_check
        %p1839 = pneg %p1838
      $region46: #{tpu_custom_call.1} parent=5 // pred_check_branch
        %1841 = sbr.rel (%p1839) target = $region48
      $region47: #{tpu_custom_call.1} parent=5 // pred_region
        %s1842 = ssub.s32 %s14, 2
        // Predicated region
        $region49: #{tpu_custom_call.1} parent=47 // pred_check
          %p1843 = pneg %p169
        $region50: #{tpu_custom_call.1} parent=47 // pred_check_branch
          %1845 = sbr.rel (%p1843) target = $region52
        $region51: #{tpu_custom_call.1} parent=47 // pred_region
          %s1846 = sand.u32 %s154, 1
          %s1847 = scalar_lea.sflag [#allocation3], %s1846
          %s1848 = sand.u32 %s154, 1
          %s1849 = smul.addr %s1848, 24
          %s1850 = scalar_lea.vmem [#allocation2], %s1849
          %1851 = dma.done %s1847, 384
        $region52: #{tpu_custom_call.1} parent=47 // pred_fallthru
          _
      $region48: #{tpu_custom_call.1} parent=5 // pred_fallthru
        _
    $region6: #{tpu_custom_call.1} parent=1 // loop_footer
      %s18 = sadd.s32 1, %s14
    $region7: #{tpu_custom_call.1} parent=1 // loop_footer_branch
      %13 = sbr.rel target = $region3
    $region8: #{tpu_custom_call.1} parent=1 // loop_exit
      _
    %1852 = vsyncpa [#allocation3], 1
    %s1853 = scalar_lea.sflag [#allocation3], 1
    %1854 = vsyncpa %s1853, 1

</llo_original>
